<compile_context>
chip_gen: v6e
topology: v6e:2x2x1
jax: 0.10.0
libtpu: 0.0.40
codegen_flags: <defaults>
</compile_context>

<pallas_src>
import functools

import numpy as np
import jax
import jax.numpy as jnp
from jax.experimental import pallas as pl
from jax.experimental.pallas import tpu as pltpu


def _bilinear_matrix(n_in, n_out):
    """align_corners=True bilinear interpolation matrix, shape (n_out, n_in)."""
    A = np.zeros((n_out, n_in), dtype=np.float32)
    if n_in == 1 or n_out == 1:
        A[:, 0] = 1.0
        return A
    for i in range(n_out):
        src = i * (n_in - 1) / (n_out - 1)
        i0 = int(np.floor(src))
        i1 = min(i0 + 1, n_in - 1)
        w1 = src - i0
        A[i, i0] += 1.0 - w1
        A[i, i1] += w1
    return A


def _vmem_budget_bytes():
    """Generation-aware scoped-VMEM limit (~3/4 of physical, capped at 100 MiB)."""
    cap = 128 * 1024 * 1024
    try:
        cap = int(getattr(pltpu.get_tpu_info(), "vmem_capacity_bytes", cap))
    except Exception:
        pass
    return max(32 * 1024 * 1024, min(cap * 3 // 4, 100 * 1024 * 1024))


def _pick_tile(extent, align, min_tiles, budget_bytes, bytes_fn, max_tile=None):
    """Largest divisor of `extent` that is a multiple of `align`, keeps at least
    `min_tiles` grid steps, and fits `budget_bytes` (per bytes_fn)."""
    if extent % align != 0:
        return extent
    cands = [d for d in range(align, extent + 1, align)
             if extent % d == 0
             and extent // d >= min_tiles
             and (max_tile is None or d <= max_tile)]
    if not cands:
        return extent
    within = [d for d in cands if bytes_fn(d) <= budget_bytes]
    return max(within) if within else min(cands)


def _resbone_up_kernel(x_ref, ah_ref, awt_ref, w_ref, b_ref, o_ref, *,
                       add_residual):
    # x_ref:   (1, C_in, SH, W)   source-row slab for this (batch, row-tile)
    # ah_ref:  (1, TH, SH)        row-interp weights restricted to the slab
    # awt_ref: (W, W2)            column-interp matrix (transposed)
    # w_ref:   (C_out, C_in)      1x1 conv weight with BN scale folded in
    # b_ref:   (C_out, 1, 1)      folded BN bias (f32)
    # o_ref:   (1, C_out, TH, W2)
    x = x_ref[0]                                         # (C, SH, W)
    ah = ah_ref[0]                                       # (TH, SH)
    C = x.shape[0]
    ah_b = jnp.broadcast_to(ah, (C,) + ah.shape)         # (C, TH, SH)

    # Separable bilinear upsample; both matmuls accumulate in f32 on the MXU.
    xh = jnp.einsum('cps,csw->cpw', ah_b, x,
                    preferred_element_type=jnp.float32)          # (C, TH, W)
    xh = xh if xh.dtype == x.dtype else xh.astype(x.dtype)
    xu = jnp.einsum('cpw,wq->cpq', xh, awt_ref[...],
                    preferred_element_type=jnp.float32)          # (C, TH, W2) f32

    # ReLU -> (BN folded into conv) -> 1x1 conv
    r = jnp.maximum(xu, 0.0)                                     # f32
    r = r if r.dtype == x.dtype else r.astype(x.dtype)
    y = jnp.einsum('oc,cpq->opq', w_ref[...], r,
                   preferred_element_type=jnp.float32)           # (C_out, TH, W2)
    y = y + b_ref[...]                                           # folded BN shift
    if add_residual:
        y = y + xu                                               # pre-ReLU identity
    o_ref[0] = y.astype(o_ref.dtype)


def _resbone_plain_kernel(x_ref, w_ref, b_ref, o_ref, *, add_residual):
    # up_sample=False: lane-dense 1x1 conv over a tile of flattened pixels.
    # x_ref: (1, C_in, TP); w_ref: (C_out, C_in); b_ref: (C_out, 1).
    xt = x_ref[0]                                                # (C_in, TP)
    r = jnp.maximum(xt, 0)                                       # ReLU in compute dtype
    y = jnp.dot(w_ref[...], r, preferred_element_type=jnp.float32)
    y = y + b_ref[...]
    if add_residual:
        y = y + xt.astype(jnp.float32)
    o_ref[0] = y.astype(o_ref.dtype)


def res_bone_block(x, conv_w, gamma, beta, running_mean, running_var, *,
                   up_sample=True, end_block=False, eps=1e-5,
                   compute_dtype=jnp.float32, out_dtype=jnp.float32,
                   max_tile_rows=None):
    N, C_in, H, W = x.shape
    conv_w = jnp.asarray(conv_w, jnp.float32).reshape(conv_w.shape[0], -1)
    C_out = conv_w.shape[0]
    add_residual = not end_block
    if add_residual and C_in != C_out:
        raise ValueError("residual path requires channel_in == channel_out")

    # Fold eval-mode BatchNorm into the 1x1 conv.
    inv_std = 1.0 / jnp.sqrt(jnp.asarray(running_var, jnp.float32) + eps)
    scale = jnp.asarray(gamma, jnp.float32) * inv_std
    shift = (jnp.asarray(beta, jnp.float32)
             - jnp.asarray(running_mean, jnp.float32) * scale)
    w_f = (conv_w * scale[None, :]).astype(compute_dtype)         # (C_out, C_in)
    bias = (conv_w @ shift).astype(jnp.float32)                   # (C_out,)

    x_c = x.astype(compute_dtype)
    isz = jnp.dtype(compute_dtype).itemsize
    osz = jnp.dtype(out_dtype).itemsize
    vmem_limit = _vmem_budget_bytes()
    budget = vmem_limit // 3                   # headroom for double buffering
    row_align = {4: 8, 2: 16, 1: 32}.get(isz, 8)
    min_tiles = 2 if N == 1 else 1             # keep both v7x TensorCores busy
    cparams = pltpu.CompilerParams(
        dimension_semantics=("parallel", "parallel"),
        vmem_limit_bytes=int(vmem_limit))

    if up_sample:
        H2, W2 = 2 * H, 2 * W
        Ah_np = _bilinear_matrix(H, H2)                           # (H2, H)
        Aw_np = _bilinear_matrix(W, W2)                           # (W2, W)

        def up_bytes(th):
            sh = min(H, th // 2 + 2)
            return (2 * C_in * sh * W * isz                       # x slab (x2 buf)
                    + 2 * th * sh * isz                           # Ah tile (x2 buf)
                    + 2 * C_out * th * W2 * osz                   # out tile (x2 buf)
                    + 4 * C_in * th * (W + 3 * W2)                # f32 intermediates
                    + 2 * (W * W2 + C_out * C_in) * isz)

        TH = _pick_tile(H2, row_align, min_tiles, budget, up_bytes, max_tile_rows)
        n_tiles = H2 // TH

        # Per-row-tile source slab: only the source rows each tile touches.
        spans = []
        for j in range(n_tiles):
            rows = Ah_np[j * TH:(j + 1) * TH]
            nz = np.nonzero(np.any(rows != 0.0, axis=0))[0]
            spans.append((int(nz.min()), int(nz.max())))
        SH = max(hi - lo + 1 for lo, hi in spans)
        starts = [min(lo, H - SH) for lo, _ in spans]
        ah_tiles = np.stack(
            [Ah_np[j * TH:(j + 1) * TH, starts[j]:starts[j] + SH]
             for j in range(n_tiles)], axis=0)                    # (n_tiles, TH, SH)
        ah_tiles = jnp.asarray(ah_tiles).astype(compute_dtype)
        awt = jnp.asarray(Aw_np.T).astype(compute_dtype)          # (W, W2)
        bias3 = bias.reshape(C_out, 1, 1)

        if n_tiles == 1:
            x_slabs = x_c                       # SH == H; zero-copy
        else:
            x_slabs = jnp.stack([x_c[:, :, s:s + SH, :] for s in starts],
                                axis=1).reshape(N * n_tiles, C_in, SH, W)

        flops = N * n_tiles * (2 * C_in * TH * SH * W
                               + 2 * C_in * TH * W * W2
                               + 2 * C_out * C_in * TH * W2)
        bytes_accessed = (int(x_slabs.size) * isz + int(ah_tiles.size) * isz
                          + W * W2 * isz + C_out * C_in * isz + C_out * 4
                          + N * C_out * H2 * W2 * osz)

        kernel = functools.partial(_resbone_up_kernel, add_residual=add_residual)
        out = pl.pallas_call(
            kernel,
            out_shape=jax.ShapeDtypeStruct((N, C_out, H2, W2), out_dtype),
            grid_spec=pltpu.PrefetchScalarGridSpec(
                num_scalar_prefetch=0,
                grid=(N, n_tiles),
                in_specs=[
                    pl.BlockSpec((1, C_in, SH, W),
                                 lambda n, j: (n * n_tiles + j, 0, 0, 0)),
                    pl.BlockSpec((1, TH, SH), lambda n, j: (j, 0, 0)),
                    pl.BlockSpec((W, W2), lambda n, j: (0, 0)),
                    pl.BlockSpec((C_out, C_in), lambda n, j: (0, 0)),
                    pl.BlockSpec((C_out, 1, 1), lambda n, j: (0, 0, 0)),
                ],
                out_specs=pl.BlockSpec((1, C_out, TH, W2),
                                       lambda n, j: (n, 0, j, 0)),
            ),
            compiler_params=cparams,
            cost_estimate=pl.CostEstimate(flops=int(flops), transcendentals=0,
                                          bytes_accessed=int(bytes_accessed)),
        )(x_slabs, ah_tiles, awt, w_f, bias3)
        return out

    # ---- no upsample: lane-dense 1x1 conv over flattened pixels ----
    P = H * W
    x2 = x_c.reshape(N, C_in, P)

    def plain_bytes(tp):
        return (2 * C_in * tp * isz + 2 * C_out * tp * osz
                + 4 * (C_out + C_in) * tp + 2 * C_out * C_in * isz)

    TP = _pick_tile(P, 128, min_tiles, budget, plain_bytes, None)
    n_tiles = P // TP
    bias2 = bias.reshape(C_out, 1)

    flops = 2 * N * C_out * C_in * P
    bytes_accessed = (int(x2.size) * isz + C_out * C_in * isz + C_out * 4
                      + N * C_out * P * osz)
    kernel = functools.partial(_resbone_plain_kernel, add_residual=add_residual)
    out = pl.pallas_call(
        kernel,
        out_shape=jax.ShapeDtypeStruct((N, C_out, P), out_dtype),
        grid_spec=pltpu.PrefetchScalarGridSpec(
            num_scalar_prefetch=0,
            grid=(N, n_tiles),
            in_specs=[
                pl.BlockSpec((1, C_in, TP), lambda n, j: (n, 0, j)),
                pl.BlockSpec((C_out, C_in), lambda n, j: (0, 0)),
                pl.BlockSpec((C_out, 1), lambda n, j: (0, 0)),
            ],
            out_specs=pl.BlockSpec((1, C_out, TP), lambda n, j: (n, 0, j)),
        ),
        compiler_params=cparams,
        cost_estimate=pl.CostEstimate(flops=int(flops), transcendentals=0,
                                      bytes_accessed=int(bytes_accessed)),
    )(x2, w_f, bias2)
    return out.reshape(N, C_out, H, W)


def res_bone_block_ref(x, conv_w, gamma, beta, running_mean, running_var, *,
                       up_sample=True, end_block=False, eps=1e-5):
    """Pure-JAX reference (separable bilinear upsample, f32)."""
    conv_w = jnp.asarray(conv_w, jnp.float32).reshape(conv_w.shape[0], -1)
    if up_sample:
        N, C, H, W = x.shape
        Ah = jnp.asarray(_bilinear_matrix(H, 2 * H))
        Aw = jnp.asarray(_bilinear_matrix(W, 2 * W))
        x = jnp.einsum('ph,nchw,qw->ncpq', Ah, x, Aw)
    identity = x
    r = jnp.maximum(x, 0.0)
    bn = ((r - running_mean[None, :, None, None])
          / jnp.sqrt(running_var[None, :, None, None] + eps)
          * gamma[None, :, None, None] + beta[None, :, None, None])
    y = jnp.einsum('oc,nchw->nohw', conv_w, bn)
    if not end_block:
        y = y + identity
    return y


if __name__ == "__main__":
    # batch=2, channel_in=channel_out=8, spatial 16x16 -> 32x32 out
    N, C_IN, C_OUT, H, W = 2, 8, 8, 16, 16

    key = jax.random.PRNGKey(0)
    kx, kw, kg, kb, km, kv, kw2 = jax.random.split(key, 7)

    x = jax.random.normal(kx, (N, C_IN, H, W), dtype=jnp.float32)
    conv_w = jax.random.normal(kw, (C_OUT, C_IN), dtype=jnp.float32) * 0.2
    gamma = 1.0 + 0.1 * jax.random.normal(kg, (C_IN,), dtype=jnp.float32)
    beta = 0.1 * jax.random.normal(kb, (C_IN,), dtype=jnp.float32)
    running_mean = 0.1 * jax.random.normal(km, (C_IN,), dtype=jnp.float32)
    running_var = jax.random.uniform(kv, (C_IN,), dtype=jnp.float32,
                                     minval=0.5, maxval=1.5)
    bn_args = (gamma, beta, running_mean, running_var)

    ref = res_bone_block_ref(x, conv_w, *bn_args, up_sample=True, end_block=False)
    ref = jax.block_until_ready(ref)

    # 1) default config (upsample + residual), f32 compute
    out = res_bone_block(x, conv_w, *bn_args, up_sample=True, end_block=False)
    out = jax.block_until_ready(out)
    assert out.shape == (N, C_OUT, 2 * H, 2 * W), out.shape
    assert jnp.allclose(out, ref, atol=2e-2, rtol=2e-2), \
        f"f32 max abs diff {jnp.max(jnp.abs(out - ref))}"

    # 2) same config but force multiple row tiles (exercises halo slab logic)
    out_mt = res_bone_block(x, conv_w, *bn_args, up_sample=True, end_block=False,
                            max_tile_rows=8)
    out_mt = jax.block_until_ready(out_mt)
    assert jnp.allclose(out_mt, ref, atol=2e-2, rtol=2e-2), \
        f"multi-tile max abs diff {jnp.max(jnp.abs(out_mt - ref))}"

    # 3) bf16 operands with f32 accumulation
    out_bf = res_bone_block(x, conv_w, *bn_args, up_sample=True, end_block=False,
                            compute_dtype=jnp.bfloat16)
    out_bf = jax.block_until_ready(out_bf)
    assert jnp.allclose(out_bf, ref, atol=6e-2, rtol=6e-2), \
        f"bf16 max abs diff {jnp.max(jnp.abs(out_bf - ref))}"

    # 4) up_sample=False path (lane-dense flattened-pixel conv)
    out_nu = res_bone_block(x, conv_w, *bn_args, up_sample=False, end_block=False)
    out_nu = jax.block_until_ready(out_nu)
    ref_nu = res_bone_block_ref(x, conv_w, *bn_args, up_sample=False,
                                end_block=False)
    assert out_nu.shape == (N, C_OUT, H, W), out_nu.shape
    assert jnp.allclose(out_nu, ref_nu, atol=2e-2, rtol=2e-2), \
        f"no-upsample max abs diff {jnp.max(jnp.abs(out_nu - ref_nu))}"

    # 5) end_block=True (no residual, C_out != C_in allowed)
    conv_w_end = jax.random.normal(kw2, (4, C_IN), dtype=jnp.float32) * 0.2
    out_end = res_bone_block(x, conv_w_end, *bn_args, up_sample=True,
                             end_block=True)
    out_end = jax.block_until_ready(out_end)
    ref_end = res_bone_block_ref(x, conv_w_end, *bn_args, up_sample=True,
                                 end_block=True)
    assert out_end.shape == (N, 4, 2 * H, 2 * W), out_end.shape
    assert jnp.allclose(out_end, ref_end, atol=2e-2, rtol=2e-2), \
        f"end-block max abs diff {jnp.max(jnp.abs(out_end - ref_end))}"

    print("KERNEL_OK")
</pallas_src>

<mosaic_0001>
module attributes {stable_mosaic.version = 11 : i64} {
  func.func @_resbone_up_kernel(%arg0: i32, %arg1: i32, %arg2: memref<1x8x16x16xf32, #tpu.memory_space<vmem>>, %arg3: memref<1x32x16xf32, #tpu.memory_space<vmem>>, %arg4: memref<16x32xf32, #tpu.memory_space<vmem>>, %arg5: memref<8x8xf32, #tpu.memory_space<vmem>>, %arg6: memref<8x1x1xf32, #tpu.memory_space<vmem>>, %arg7: memref<1x8x32x32xf32, #tpu.memory_space<vmem>>) attributes {dimension_semantics = [#tpu.dimension_semantics<parallel>, #tpu.dimension_semantics<parallel>], iteration_bounds = array<i64: 2, 1>, scalar_prefetch = 0 : i64, scratch_operands = 0 : i64, tpu.core_type = #tpu.core_type<tc>, window_params = [{transform_indices = @transform_0, window_bounds = array<i64: 1, 8, 16, 16>}, {transform_indices = @transform_1, window_bounds = array<i64: 1, 32, 16>}, {pipeline_mode = #tpu.pipeline_mode<synchronous>, transform_indices = @transform_2, window_bounds = array<i64: 16, 32>}, {pipeline_mode = #tpu.pipeline_mode<synchronous>, transform_indices = @transform_3, window_bounds = array<i64: 8, 8>}, {pipeline_mode = #tpu.pipeline_mode<synchronous>, transform_indices = @transform_4, window_bounds = array<i64: 8, 1, 1>}, {transform_indices = @transform_5, window_bounds = array<i64: 1, 8, 32, 32>}]} {
    %c0 = arith.constant 0 : index
    %c0_0 = arith.constant 0 : index
    %c0_1 = arith.constant 0 : index
    %c0_2 = arith.constant 0 : index
    %0 = vector.load %arg2[%c0, %c0_0, %c0_1, %c0_2] : memref<1x8x16x16xf32, #tpu.memory_space<vmem>>, vector<1x8x16x16xf32>
    %1 = vector.shape_cast %0 : vector<1x8x16x16xf32> to vector<8x16x16xf32>
    %c0_3 = arith.constant 0 : index
    %c0_4 = arith.constant 0 : index
    %c0_5 = arith.constant 0 : index
    %2 = vector.load %arg3[%c0_3, %c0_4, %c0_5] : memref<1x32x16xf32, #tpu.memory_space<vmem>>, vector<1x32x16xf32>
    %3 = vector.shape_cast %2 : vector<1x32x16xf32> to vector<32x16xf32>
    %4 = vector.shape_cast %3 : vector<32x16xf32> to vector<1x32x16xf32>
    %5 = vector.broadcast %4 : vector<1x32x16xf32> to vector<8x32x16xf32>
    "tpu.trace_start"() <{level = 10 : i32, message = "cps,csw->cpw"}> : () -> ()
    %cst = arith.constant dense<0.000000e+00> : vector<8x32x16xf32>
    %6 = tpu.matmul %5, %1, %cst {dimension_numbers = #tpu.dot_dimension_numbers<[2], [1], [1], [2], [0, 0, 0, 1, 1, 2], [0], [0]>} : vector<8x32x16xf32>, vector<8x16x16xf32>, vector<8x32x16xf32> -> vector<8x32x16xf32>
    "tpu.trace_stop"() : () -> ()
    %c0_6 = arith.constant 0 : index
    %c0_7 = arith.constant 0 : index
    %7 = vector.load %arg4[%c0_6, %c0_7] : memref<16x32xf32, #tpu.memory_space<vmem>>, vector<16x32xf32>
    "tpu.trace_start"() <{level = 10 : i32, message = "cpw,wq->cpq"}> : () -> ()
    %cst_8 = arith.constant dense<0.000000e+00> : vector<8x32x32xf32>
    %8 = tpu.matmul %6, %7, %cst_8 {dimension_numbers = #tpu.dot_dimension_numbers<[2], [0], [0, 1], [1], [0, 0, 0, 1, 1, 1], [], []>} : vector<8x32x16xf32>, vector<16x32xf32>, vector<8x32x32xf32> -> vector<8x32x32xf32>
    "tpu.trace_stop"() : () -> ()
    %cst_9 = arith.constant 0.000000e+00 : f32
    %9 = vector.broadcast %cst_9 : f32 to vector<8x32x32xf32>
    %10 = arith.maximumf %8, %9 : vector<8x32x32xf32>
    %c0_10 = arith.constant 0 : index
    %c0_11 = arith.constant 0 : index
    %11 = vector.load %arg5[%c0_10, %c0_11] : memref<8x8xf32, #tpu.memory_space<vmem>>, vector<8x8xf32>
    "tpu.trace_start"() <{level = 10 : i32, message = "oc,cpq->opq"}> : () -> ()
    %cst_12 = arith.constant dense<0.000000e+00> : vector<8x32x32xf32>
    %12 = tpu.matmul %11, %10, %cst_12 {dimension_numbers = #tpu.dot_dimension_numbers<[1], [0], [0], [1, 2], [0, 0, 1, 1, 1, 2], [], []>} : vector<8x8xf32>, vector<8x32x32xf32>, vector<8x32x32xf32> -> vector<8x32x32xf32>
    "tpu.trace_stop"() : () -> ()
    %c0_13 = arith.constant 0 : index
    %c0_14 = arith.constant 0 : index
    %c0_15 = arith.constant 0 : index
    %13 = vector.load %arg6[%c0_13, %c0_14, %c0_15] : memref<8x1x1xf32, #tpu.memory_space<vmem>>, vector<8x1x1xf32>
    %14 = vector.broadcast %13 : vector<8x1x1xf32> to vector<8x32x32xf32>
    %15 = arith.addf %12, %14 : vector<8x32x32xf32>
    %16 = arith.addf %15, %8 : vector<8x32x32xf32>
    %c0_16 = arith.constant 0 : index
    %c0_17 = arith.constant 0 : index
    %c0_18 = arith.constant 0 : index
    %c0_19 = arith.constant 0 : index
    %17 = vector.load %arg7[%c0_16, %c0_17, %c0_18, %c0_19] : memref<1x8x32x32xf32, #tpu.memory_space<vmem>>, vector<1x8x32x32xf32>
    %18 = vector.shape_cast %17 : vector<1x8x32x32xf32> to vector<8x32x32xf32>
    %19 = vector.shape_cast %16 : vector<8x32x32xf32> to vector<1x8x32x32xf32>
    tpu.vector_store %arg7[%c0_16, %c0_17, %c0_18, %c0_19], %19 {strides = array<i32>} : memref<1x8x32x32xf32, #tpu.memory_space<vmem>>, vector<1x8x32x32xf32>,
    return
  }
  func.func @transform_0(%arg0: i32, %arg1: i32) -> (i32, i32, i32, i32) {
    %c1_i32 = arith.constant 1 : i32
    %0 = arith.muli %arg0, %c1_i32 : i32
    %1 = arith.addi %0, %arg1 : i32
    %c0_i32 = arith.constant 0 : i32
    %c0_i32_0 = arith.constant 0 : i32
    %c0_i32_1 = arith.constant 0 : i32
    %c0_i32_2 = arith.constant 0 : i32
    return %1, %c0_i32, %c0_i32_0, %c0_i32_1 : i32, i32, i32, i32
  }
  func.func @transform_1(%arg0: i32, %arg1: i32) -> (i32, i32, i32) {
    %c0_i32 = arith.constant 0 : i32
    %c0_i32_0 = arith.constant 0 : i32
    %c0_i32_1 = arith.constant 0 : i32
    return %arg1, %c0_i32, %c0_i32_0 : i32, i32, i32
  }
  func.func @transform_2(%arg0: i32, %arg1: i32) -> (i32, i32) {
    %c0_i32 = arith.constant 0 : i32
    %c0_i32_0 = arith.constant 0 : i32
    %c0_i32_1 = arith.constant 0 : i32
    return %c0_i32, %c0_i32_0 : i32, i32
  }
  func.func @transform_3(%arg0: i32, %arg1: i32) -> (i32, i32) {
    %c0_i32 = arith.constant 0 : i32
    %c0_i32_0 = arith.constant 0 : i32
    %c0_i32_1 = arith.constant 0 : i32
    return %c0_i32, %c0_i32_0 : i32, i32
  }
  func.func @transform_4(%arg0: i32, %arg1: i32) -> (i32, i32, i32) {
    %c0_i32 = arith.constant 0 : i32
    %c0_i32_0 = arith.constant 0 : i32
    %c0_i32_1 = arith.constant 0 : i32
    %c0_i32_2 = arith.constant 0 : i32
    return %c0_i32, %c0_i32_0, %c0_i32_1 : i32, i32, i32
  }
  func.func @transform_5(%arg0: i32, %arg1: i32) -> (i32, i32, i32, i32) {
    %c0_i32 = arith.constant 0 : i32
    %c0_i32_0 = arith.constant 0 : i32
    %c0_i32_1 = arith.constant 0 : i32
    return %arg0, %c0_i32, %arg1, %c0_i32_0 : i32, i32, i32, i32
  }
}

</mosaic_0001>

<llo_original>
// kernel: tpu_custom_call.1
$region0: #{tpu_custom_call.1}
  #allocation0 [shape = 'u32[]', space=smem, size = 0x4, offset = 0x4, fixed_abs, tag = 'smem constant byte address 0x4 - core index']
  #allocation1 [shape = 'u32[144,128]{1,0:T(1,128)}', space=vmem, size = 0x12000, scoped, tag = 'internal scratch']
  %s0 = inlined_call_operand.hbm [shape: f32[2,8,16,16], index: 0, kind: input, shape index: {}]
  %s1 = inlined_call_operand.vmem [shape: f32[1,32,16], index: 1, kind: input, shape index: {}]
  %s2 = inlined_call_operand.vmem [shape: f32[16,32], index: 2, kind: input, shape index: {}]
  %s3 = inlined_call_operand.vmem [shape: f32[8,8], index: 3, kind: input, shape index: {}]
  %s4 = inlined_call_operand.vmem [shape: f32[8,1,1], index: 4, kind: input, shape index: {}]
  %s5 = inlined_call_operand.hbm [shape: f32[2,8,32,32], index: 5, kind: output, shape index: {}]
  %s6 = sld [smem:[#allocation0]]
  $region57: #{tpu_custom_call.1} parent=0
    _
  %s8 = ssub.s32 1, %s6
  %s9 = scalar_select 0, %s8, %s6
  $region1: #{tpu_custom_call.1} parent=0
    #allocation2 [shape = 'u8[131072]{0}', space=vmem, size = 0x20000, scoped, tag = 'input window, operand 0']
    #allocation3 [shape = 's32[2]{0}', space=sflag, size = 0x8, scoped, tag = 'scoped memory for tpu_custom_call.1']
    #allocation4 [shape = 's32[2]{0}', space=sflag, size = 0x8, scoped, tag = 'scoped memory for tpu_custom_call.1']
    #allocation5 [shape = 'u8[262144]{0}', space=vmem, size = 0x40000, scoped, tag = 'output window, operand 0']
    %10 = vsyncpa [#allocation3], 0
    %s11 = scalar_lea.sflag [#allocation3], 1
    %12 = vsyncpa %s11, 0
    %13 = vsyncpa [#allocation4], 0
    %s14 = scalar_lea.sflag [#allocation4], 1
    %15 = vsyncpa %s14, 0
    loop: start=0, step=1, limit=4
    $region2: #{tpu_custom_call.1} parent=1 // loop_pre_header
      _
    $region3: #{tpu_custom_call.1} parent=1 // loop_header
      %s17 = sphi 0, %s21
      %p18 = scmp.ge.s32.totalorder %s17, 4
      %s24 = sphi 0, %s36
      %s25 = sphi 0, %s32
      %s26 = sphi 0, %s24
      %s27 = sphi 0, %s25
      %s28 = sphi 0, %s26
      %s29 = sphi 0, %s27
      %s41 = sphi 0, %s43
      %s44 = sphi 0, %s41
      %s45 = sphi 0, %s44
      %s61 = sphi 0, %s45
      %s67 = sphi 0, %s69
      %s70 = sphi 0, %s67
      %s71 = sphi 0, %s70
      %s87 = sphi 0, %s71
      %s91 = sphi 0, %s91
      %s93 = sphi 0, %s91
      %s94 = sphi 0, %s93
      %s108 = sphi 0, %s94
      %s112 = sphi 0, %s112
      %s114 = sphi 0, %s112
      %s115 = sphi 0, %s114
      %s129 = sphi 0, %s115
      %s133 = sphi 0, %s133
      %s135 = sphi 0, %s133
      %s136 = sphi 0, %s135
      %s150 = sphi 0, %s136
      %s158 = sphi 0, %s160
      %s161 = sphi 0, %s158
      %s162 = sphi 0, %s161
      %s178 = sphi 0, %s162
    $region4: #{tpu_custom_call.1} parent=1 // loop_header_branch
      %20 = sbr.rel (%p18) target = $region8
    $region5: #{tpu_custom_call.1} parent=1 // loop_body
      %s22 = ssub.s32 %s17, 1
      %s23 = ssub.s32 %s17, 2
      %s30 = sadd.s32 1, %s25
      %p31 = scmp.ge.s32.totalorder %s30, 1
      %s32 = scalar_select %p31, 0, %s30
      %s33 = sadd.s32 1, %s24
      %s34 = scalar_select %p31, %s33, %s24
      %p35 = scmp.ge.s32.totalorder %s34, 2
      %s36 = scalar_select %p35, 0, %s34
      %s37 = sadd.s32 %s24, %s25
      %s38 = sadd.s32 %s36, %s32
      %s39 = ssub.s32 %s37, %s38
      %p40 = scmp.eq.s32.totalorder %s39, 0
      %s42 = sadd.s32 %s41, 1
      %s43 = scalar_select %p40, %s41, %s42
      %p46 = pneg %p40
      %p47 = scmp.eq.s32.totalorder %s17, 1
      %p48 = por %p46, %p47
      %p49 = scmp.ne.s32.totalorder %s41, %s44
      %p50 = scmp.eq.s32.totalorder %s17, 0
      %p51 = por %p49, %p50
      %p52 = scmp.ne.s32.totalorder %s41, %s44
      %p53 = scmp.eq.s32.totalorder %s22, 1
      %p54 = por %p52, %p53
      %p55 = scmp.ne.s32.totalorder %s44, %s45
      %p56 = scmp.eq.s32.totalorder %s22, 0
      %p57 = por %p55, %p56
      %p58 = scmp.ne.s32.totalorder %s44, %s45
      %p59 = scmp.eq.s32.totalorder %s23, 1
      %p60 = por %p58, %p59
      %p62 = scmp.ne.s32.totalorder %s45, %s61
      %p63 = scmp.eq.s32.totalorder %s23, 0
      %p64 = por %p62, %p63
      %s65 = ssub.s32 %s25, %s32
      %p66 = scmp.eq.s32.totalorder %s65, 0
      %s68 = sadd.s32 %s67, 1
      %s69 = scalar_select %p66, %s67, %s68
      %p72 = pneg %p66
      %p73 = scmp.eq.s32.totalorder %s17, 1
      %p74 = por %p72, %p73
      %p75 = scmp.ne.s32.totalorder %s67, %s70
      %p76 = scmp.eq.s32.totalorder %s17, 0
      %p77 = por %p75, %p76
      %p78 = scmp.ne.s32.totalorder %s67, %s70
      %p79 = scmp.eq.s32.totalorder %s22, 1
      %p80 = por %p78, %p79
      %p81 = scmp.ne.s32.totalorder %s70, %s71
      %p82 = scmp.eq.s32.totalorder %s22, 0
      %p83 = por %p81, %p82
      %p84 = scmp.ne.s32.totalorder %s70, %s71
      %p85 = scmp.eq.s32.totalorder %s23, 1
      %p86 = por %p84, %p85
      %p88 = scmp.ne.s32.totalorder %s71, %s87
      %p89 = scmp.eq.s32.totalorder %s23, 0
      %p90 = por %p88, %p89
      %s92 = sadd.s32 %s91, 1
      %p95 = scmp.eq.s32.totalorder %s17, 1
      %p96 = scmp.ne.s32.totalorder %s91, %s93
      %p97 = scmp.eq.s32.totalorder %s17, 0
      %p98 = por %p96, %p97
      %p99 = scmp.ne.s32.totalorder %s91, %s93
      %p100 = scmp.eq.s32.totalorder %s22, 1
      %p101 = por %p99, %p100
      %p102 = scmp.ne.s32.totalorder %s93, %s94
      %p103 = scmp.eq.s32.totalorder %s22, 0
      %p104 = por %p102, %p103
      %p105 = scmp.ne.s32.totalorder %s93, %s94
      %p106 = scmp.eq.s32.totalorder %s23, 1
      %p107 = por %p105, %p106
      %p109 = scmp.ne.s32.totalorder %s94, %s108
      %p110 = scmp.eq.s32.totalorder %s23, 0
      %p111 = por %p109, %p110
      %s113 = sadd.s32 %s112, 1
      %p116 = scmp.eq.s32.totalorder %s17, 1
      %p117 = scmp.ne.s32.totalorder %s112, %s114
      %p118 = scmp.eq.s32.totalorder %s17, 0
      %p119 = por %p117, %p118
      %p120 = scmp.ne.s32.totalorder %s112, %s114
      %p121 = scmp.eq.s32.totalorder %s22, 1
      %p122 = por %p120, %p121
      %p123 = scmp.ne.s32.totalorder %s114, %s115
      %p124 = scmp.eq.s32.totalorder %s22, 0
      %p125 = por %p123, %p124
      %p126 = scmp.ne.s32.totalorder %s114, %s115
      %p127 = scmp.eq.s32.totalorder %s23, 1
      %p128 = por %p126, %p127
      %p130 = scmp.ne.s32.totalorder %s115, %s129
      %p131 = scmp.eq.s32.totalorder %s23, 0
      %p132 = por %p130, %p131
      %s134 = sadd.s32 %s133, 1
      %p137 = scmp.eq.s32.totalorder %s17, 1
      %p138 = scmp.ne.s32.totalorder %s133, %s135
      %p139 = scmp.eq.s32.totalorder %s17, 0
      %p140 = por %p138, %p139
      %p141 = scmp.ne.s32.totalorder %s133, %s135
      %p142 = scmp.eq.s32.totalorder %s22, 1
      %p143 = por %p141, %p142
      %p144 = scmp.ne.s32.totalorder %s135, %s136
      %p145 = scmp.eq.s32.totalorder %s22, 0
      %p146 = por %p144, %p145
      %p147 = scmp.ne.s32.totalorder %s135, %s136
      %p148 = scmp.eq.s32.totalorder %s23, 1
      %p149 = por %p147, %p148
      %p151 = scmp.ne.s32.totalorder %s136, %s150
      %p152 = scmp.eq.s32.totalorder %s23, 0
      %p153 = por %p151, %p152
      %s154 = ssub.s32 %s24, %s36
      %s155 = ssub.s32 %s25, %s32
      %s156 = sor.u32 %s154, %s155
      %p157 = scmp.eq.s32.totalorder %s156, 0
      %s159 = sadd.s32 %s158, 1
      %s160 = scalar_select %p157, %s158, %s159
      %p163 = pneg %p157
      %p164 = scmp.eq.s32.totalorder %s17, 1
      %p165 = por %p163, %p164
      %p166 = scmp.ne.s32.totalorder %s158, %s161
      %p167 = scmp.eq.s32.totalorder %s17, 0
      %p168 = por %p166, %p167
      %p169 = scmp.ne.s32.totalorder %s158, %s161
      %p170 = scmp.eq.s32.totalorder %s22, 1
      %p171 = por %p169, %p170
      %p172 = scmp.ne.s32.totalorder %s161, %s162
      %p173 = scmp.eq.s32.totalorder %s22, 0
      %p174 = por %p172, %p173
      %p175 = scmp.ne.s32.totalorder %s161, %s162
      %p176 = scmp.eq.s32.totalorder %s23, 1
      %p177 = por %p175, %p176
      %p179 = scmp.ne.s32.totalorder %s162, %s178
      %p180 = scmp.eq.s32.totalorder %s23, 0
      %p181 = por %p179, %p180
      %p182 = scmp.le.s32.totalorder 1, %s17
      %p183 = scmp.lt.s32.totalorder %s17, 3
      %p184 = pnand %p182, %p183
      %p185 = pneg %p184
      // Predicated region
      $region9: #{tpu_custom_call.1} parent=5 // pred_check
        _
      $region10: #{tpu_custom_call.1} parent=5 // pred_check_branch
        %187 = sbr.rel (%p184) target = $region12
      $region11: #{tpu_custom_call.1} parent=5 // pred_region
        %s188 = ssub.s32 %s17, 1
        // Predicated region
        $region13: #{tpu_custom_call.1} parent=11 // pred_check
          %p189 = pneg %p83
        $region14: #{tpu_custom_call.1} parent=11 // pred_check_branch
          %191 = sbr.rel (%p189) target = $region16
        $region15: #{tpu_custom_call.1} parent=11 // pred_region
          %p192 = scmp.lt.s32.totalorder %s27, 0
          %s193 = scalar_select %p192, %s27, 0
          %s194 = smul.addr %s193, 4
          %s195 = smul.addr %s194, 8
          %s196 = scalar_lea.vmem %s1, %s195
        $region16: #{tpu_custom_call.1} parent=11 // pred_fallthru
          _
        // Predicated region
        $region17: #{tpu_custom_call.1} parent=11 // pred_check
          %p197 = pneg %p104
        $region18: #{tpu_custom_call.1} parent=11 // pred_check_branch
          %199 = sbr.rel (%p197) target = $region20
        $region19: #{tpu_custom_call.1} parent=11 // pred_region
          _
        $region20: #{tpu_custom_call.1} parent=11 // pred_fallthru
          _
        // Predicated region
        $region21: #{tpu_custom_call.1} parent=11 // pred_check
          %p200 = pneg %p125
        $region22: #{tpu_custom_call.1} parent=11 // pred_check_branch
          %202 = sbr.rel (%p200) target = $region24
        $region23: #{tpu_custom_call.1} parent=11 // pred_region
          _
        $region24: #{tpu_custom_call.1} parent=11 // pred_fallthru
          _
        // Predicated region
        $region25: #{tpu_custom_call.1} parent=11 // pred_check
          %p203 = pneg %p146
        $region26: #{tpu_custom_call.1} parent=11 // pred_check_branch
          %205 = sbr.rel (%p203) target = $region28
        $region27: #{tpu_custom_call.1} parent=11 // pred_region
          _
        $region28: #{tpu_custom_call.1} parent=11 // pred_fallthru
          _
      $region12: #{tpu_custom_call.1} parent=5 // pred_fallthru
        _
      %p206 = scmp.lt.s32.totalorder %s17, 2
      // Predicated region
      $region29: #{tpu_custom_call.1} parent=5 // pred_check
        %p207 = pneg %p206
      $region30: #{tpu_custom_call.1} parent=5 // pred_check_branch
        %209 = sbr.rel (%p207) target = $region32
      $region31: #{tpu_custom_call.1} parent=5 // pred_region
        // Predicated region
        $region33: #{tpu_custom_call.1} parent=31 // pred_check
          %p210 = pneg %p51
        $region34: #{tpu_custom_call.1} parent=31 // pred_check_branch
          %212 = sbr.rel (%p210) target = $region36
        $region35: #{tpu_custom_call.1} parent=31 // pred_region
          %s213 = sand.u32 %s41, 1
          %s214 = scalar_lea.sflag [#allocation3], %s213
          %s215 = sand.u32 %s41, 1
          %s216 = smul.addr %s215, 128
          %s217 = scalar_lea.vmem [#allocation2], %s216
          %s218 = sadd.s32 %s24, %s25
          %s220 = ssub.s32 2048, 2048
          %221 = vsyncadd %s214, %s220
          %s222 = smul.addr %s218, 16
          %s223 = smul.addr %s222, 128
          %s224 = scalar_lea.hbm %s0, %s223
          %s225 = sshll.u32 %s217, 4
          %s226 = int_to_ptr.vmem [resolvable:$true] %s225
          %231 = dma.hbm_to_vmem [thread:$0]  %s224, 2048, %s226, %s214, 128, 128, 8
        $region36: #{tpu_custom_call.1} parent=31 // pred_fallthru
          _
      $region32: #{tpu_custom_call.1} parent=5 // pred_fallthru
        _
      %p232 = scmp.le.s32.totalorder 1, %s17
      %p233 = scmp.lt.s32.totalorder %s17, 3
      %p234 = pnand %p232, %p233
      %p235 = pneg %p234
      // Predicated region
      $region37: #{tpu_custom_call.1} parent=5 // pred_check
        _
      $region38: #{tpu_custom_call.1} parent=5 // pred_check_branch
        %237 = sbr.rel (%p234) target = $region40
      $region39: #{tpu_custom_call.1} parent=5 // pred_region
        %s238 = ssub.s32 %s17, 1
        %s239 = sand.u32 %s44, 1
        %s240 = scalar_lea.sflag [#allocation3], %s239
        %s241 = sand.u32 %s44, 1
        %s242 = smul.addr %s241, 128
        %s243 = scalar_lea.vmem [#allocation2], %s242
        // Predicated region
        $region41: #{tpu_custom_call.1} parent=39 // pred_check
          %p244 = pneg %p57
        $region42: #{tpu_custom_call.1} parent=39 // pred_check_branch
          %246 = sbr.rel (%p244) target = $region44
        $region43: #{tpu_custom_call.1} parent=39 // pred_region
          %247 = dma.done %s240, 2048
        $region44: #{tpu_custom_call.1} parent=39 // pred_fallthru
          _
        %s248 = sand.u32 %s44, 1
        %s249 = scalar_lea.sflag [#allocation3], %s248
        %s250 = sand.u32 %s44, 1
        %s251 = smul.addr %s250, 128
        %s252 = scalar_lea.vmem [#allocation2], %s251
        %p253 = pneg %p57
        %p254 = pneg %p54
        %p255 = scmp.lt.s32.totalorder %s27, 0
        %s256 = scalar_select %p255, %s27, 0
        %s257 = smul.addr %s256, 4
        %s258 = smul.addr %s257, 8
        %s259 = scalar_lea.vmem %s1, %s258
        %p260 = pneg %p83
        %p261 = pneg %p80
        %p262 = pneg %p104
        %p263 = pneg %p101
        %p264 = pneg %p125
        %p265 = pneg %p122
        %p266 = pneg %p146
        %p267 = pneg %p143
        %p268 = pneg %p174
        %p269 = pneg %p171
        %s270 = sand.u32 %s161, 1
        %s271 = scalar_lea.sflag [#allocation4], %s270
        %s272 = sand.u32 %s161, 1
        %s273 = smul.addr %s272, 256
        %s274 = scalar_lea.vmem [#allocation5], %s273
        %s275 = sadd.s32 %s26, %s27
        %p276 = scmp.lt.s32.totalorder %s27, 0
        %s277 = scalar_select %p276, %s27, 0
        %s278 = smul.addr %s277, 4
        %s279 = smul.addr %s278, 8
        %s280 = scalar_lea.vmem %s1, %s279
        %s281 = smul.u32 4, %s27
        %v282 = vld [vmem:[%s243] sm:$0xff]
        %v283 = vld [vmem:[%s243 + $0x8] sm:$0xff]
        %v284 = vld [vmem:[%s243 + $0x10] sm:$0xff]
        %v285 = vld [vmem:[%s243 + $0x18] sm:$0xff]
        %v286 = vld [vmem:[%s243 + $0x20] sm:$0xff]
        %v287 = vld [vmem:[%s243 + $0x28] sm:$0xff]
        %v288 = vld [vmem:[%s243 + $0x30] sm:$0xff]
        %v289 = vld [vmem:[%s243 + $0x38] sm:$0xff]
        %v290 = vld [vmem:[%s243 + $0x40] sm:$0xff]
        %v291 = vld [vmem:[%s243 + $0x48] sm:$0xff]
        %v292 = vld [vmem:[%s243 + $0x50] sm:$0xff]
        %v293 = vld [vmem:[%s243 + $0x58] sm:$0xff]
        %v294 = vld [vmem:[%s243 + $0x60] sm:$0xff]
        %v295 = vld [vmem:[%s243 + $0x68] sm:$0xff]
        %v296 = vld [vmem:[%s243 + $0x70] sm:$0xff]
        %v297 = vld [vmem:[%s243 + $0x78] sm:$0xff]
        %v298 = vld [vmem:[%s280] sm:$0xff]
        %v299 = vld [vmem:[%s280 + $0x8] sm:$0xff]
        %v300 = vld [vmem:[%s280 + $0x10] sm:$0xff]
        %v301 = vld [vmem:[%s280 + $0x18] sm:$0xff]
        %vm302 = vcmask 130048
        %v304 = vsel %vm302, %v298, 0
        %v307 = vsel %vm302, %v299, 0
        %v310 = vsel %vm302, %v300, 0
        %v313 = vsel %vm302, %v301, 0
        %315 = vmatprep.subr.mxu0 0.0
        %316 = vmatpush1.msra.mxu0 0.0
        %317 = vmatprep.subr.mxu0 0.0
        %318 = vmatpush1.msra.mxu0 0.0
        %319 = vmatprep.subr.mxu0 0.0
        %320 = vmatpush1.msra.mxu0 0.0
        %321 = vmatprep.subr.mxu0 0.0
        %322 = vmatpush1.msra.mxu0 0.0
        %323 = vmatprep.subr.mxu0 0.0
        %324 = vmatpush1.msra.mxu0 0.0
        %325 = vmatprep.subr.mxu0 0.0
        %326 = vmatpush1.msra.mxu0 0.0
        %327 = vmatprep.subr.mxu0 0.0
        %328 = vmatpush1.msra.mxu0 0.0
        %329 = vmatprep.subr.mxu0 0.0
        %330 = vmatpush1.msra.mxu0 0.0
        %331 = vmatprep.subr.mxu0 0.0
        %332 = vmatpush1.msra.mxu0 0.0
        %333 = vmatprep.subr.mxu0 0.0
        %334 = vmatpush1.msra.mxu0 0.0
        %335 = vmatprep.subr.mxu0 0.0
        %336 = vmatpush1.msra.mxu0 0.0
        %337 = vmatprep.subr.mxu0 0.0
        %338 = vmatpush1.msra.mxu0 0.0
        %339 = vmatprep.subr.mxu0 0.0
        %340 = vmatpush1.msra.mxu0 0.0
        %341 = vmatprep.subr.mxu0 0.0
        %342 = vmatpush1.msra.mxu0 0.0
        %343 = vmatprep.subr.mxu0 0.0
        %344 = vmatpush1.msra.mxu0 %v283
        %345 = vmatprep.subr.mxu0 0.0
        %346 = vmatpush1.msra.mxu0 %v282
        %347 = vmatprep.subr.mxu0 0.0
        %348 = vmatpush2.msra.mxu0 0.0
        %349 = vmatprep.subr.mxu0 0.0
        %350 = vmatpush2.msra.mxu0 0.0
        %351 = vmatprep.subr.mxu0 0.0
        %352 = vmatpush2.msra.mxu0 0.0
        %353 = vmatprep.subr.mxu0 0.0
        %354 = vmatpush2.msra.mxu0 0.0
        %355 = vmatprep.subr.mxu0 0.0
        %356 = vmatpush2.msra.mxu0 0.0
        %357 = vmatprep.subr.mxu0 0.0
        %358 = vmatpush2.msra.mxu0 0.0
        %359 = vmatprep.subr.mxu0 0.0
        %360 = vmatpush2.msra.mxu0 0.0
        %361 = vmatprep.subr.mxu0 0.0
        %362 = vmatpush2.msra.mxu0 0.0
        %363 = vmatprep.subr.mxu0 0.0
        %364 = vmatpush2.msra.mxu0 0.0
        %365 = vmatprep.subr.mxu0 0.0
        %366 = vmatpush2.msra.mxu0 0.0
        %367 = vmatprep.subr.mxu0 0.0
        %368 = vmatpush2.msra.mxu0 0.0
        %369 = vmatprep.subr.mxu0 0.0
        %370 = vmatpush2.msra.mxu0 0.0
        %371 = vmatprep.subr.mxu0 0.0
        %372 = vmatpush2.msra.mxu0 0.0
        %373 = vmatprep.subr.mxu0 0.0
        %374 = vmatpush2.msra.mxu0 0.0
        %375 = vmatprep.subr.mxu0 0.0
        %376 = vmatpush2.msra.mxu0 0.0
        %377 = vmatprep.subr.mxu0 0.0
        %378 = vmatpush2.msra.mxu0 0.0
        %379 = vmatprep.mubr.f32.mxu0 0.0
        %380 = vmatmul.mubr.f32.gmra.mxu0 %v304
        %v381 = vpop.f32.mrf.mxu0
        %v382 = vadd.f32 0.0, %v381
        %v383 = vpop.f32.mrf.mxu0
        %384 = vmatprep.mubr.f32.mxu0 0.0
        %385 = vmatmul.mubr.f32.gmra.mxu0 %v307
        %v386 = vpop.f32.mrf.mxu0
        %v387 = vadd.f32 0.0, %v386
        %v388 = vpop.f32.mrf.mxu0
        %389 = vmatprep.mubr.f32.mxu0 0.0
        %390 = vmatmul.mubr.f32.gmra.mxu0 %v310
        %v391 = vpop.f32.mrf.mxu0
        %v392 = vadd.f32 0.0, %v391
        %v393 = vpop.f32.mrf.mxu0
        %394 = vmatprep.mubr.f32.mxu0 0.0
        %395 = vmatmul.mubr.f32.gmra.mxu0 %v313
        %v396 = vpop.f32.mrf.mxu0
        %v397 = vadd.f32 0.0, %v396
        %v398 = vpop.f32.mrf.mxu0
        %399 = vdwg.mxu0
        %400 = vmatprep.subr.mxu0 0.0
        %401 = vmatpush1.msra.mxu0 0.0
        %402 = vmatprep.subr.mxu0 0.0
        %403 = vmatpush1.msra.mxu0 0.0
        %404 = vmatprep.subr.mxu0 0.0
        %405 = vmatpush1.msra.mxu0 0.0
        %406 = vmatprep.subr.mxu0 0.0
        %407 = vmatpush1.msra.mxu0 0.0
        %408 = vmatprep.subr.mxu0 0.0
        %409 = vmatpush1.msra.mxu0 0.0
        %410 = vmatprep.subr.mxu0 0.0
        %411 = vmatpush1.msra.mxu0 0.0
        %412 = vmatprep.subr.mxu0 0.0
        %413 = vmatpush1.msra.mxu0 0.0
        %414 = vmatprep.subr.mxu0 0.0
        %415 = vmatpush1.msra.mxu0 0.0
        %416 = vmatprep.subr.mxu0 0.0
        %417 = vmatpush1.msra.mxu0 0.0
        %418 = vmatprep.subr.mxu0 0.0
        %419 = vmatpush1.msra.mxu0 0.0
        %420 = vmatprep.subr.mxu0 0.0
        %421 = vmatpush1.msra.mxu0 0.0
        %422 = vmatprep.subr.mxu0 0.0
        %423 = vmatpush1.msra.mxu0 0.0
        %424 = vmatprep.subr.mxu0 0.0
        %425 = vmatpush1.msra.mxu0 0.0
        %426 = vmatprep.subr.mxu0 0.0
        %427 = vmatpush1.msra.mxu0 0.0
        %428 = vmatprep.subr.mxu0 0.0
        %429 = vmatpush1.msra.mxu0 %v285
        %430 = vmatprep.subr.mxu0 0.0
        %431 = vmatpush1.msra.mxu0 %v284
        %432 = vmatprep.subr.mxu0 0.0
        %433 = vmatpush2.msra.mxu0 0.0
        %434 = vmatprep.subr.mxu0 0.0
        %435 = vmatpush2.msra.mxu0 0.0
        %436 = vmatprep.subr.mxu0 0.0
        %437 = vmatpush2.msra.mxu0 0.0
        %438 = vmatprep.subr.mxu0 0.0
        %439 = vmatpush2.msra.mxu0 0.0
        %440 = vmatprep.subr.mxu0 0.0
        %441 = vmatpush2.msra.mxu0 0.0
        %442 = vmatprep.subr.mxu0 0.0
        %443 = vmatpush2.msra.mxu0 0.0
        %444 = vmatprep.subr.mxu0 0.0
        %445 = vmatpush2.msra.mxu0 0.0
        %446 = vmatprep.subr.mxu0 0.0
        %447 = vmatpush2.msra.mxu0 0.0
        %448 = vmatprep.subr.mxu0 0.0
        %449 = vmatpush2.msra.mxu0 0.0
        %450 = vmatprep.subr.mxu0 0.0
        %451 = vmatpush2.msra.mxu0 0.0
        %452 = vmatprep.subr.mxu0 0.0
        %453 = vmatpush2.msra.mxu0 0.0
        %454 = vmatprep.subr.mxu0 0.0
        %455 = vmatpush2.msra.mxu0 0.0
        %456 = vmatprep.subr.mxu0 0.0
        %457 = vmatpush2.msra.mxu0 0.0
        %458 = vmatprep.subr.mxu0 0.0
        %459 = vmatpush2.msra.mxu0 0.0
        %460 = vmatprep.subr.mxu0 0.0
        %461 = vmatpush2.msra.mxu0 0.0
        %462 = vmatprep.subr.mxu0 0.0
        %463 = vmatpush2.msra.mxu0 0.0
        %464 = vmatprep.mubr.f32.mxu0 0.0
        %465 = vmatmul.mubr.f32.gmra.mxu0 %v304
        %v466 = vpop.f32.mrf.mxu0
        %v467 = vadd.f32 0.0, %v466
        %v468 = vpop.f32.mrf.mxu0
        %469 = vmatprep.mubr.f32.mxu0 0.0
        %470 = vmatmul.mubr.f32.gmra.mxu0 %v307
        %v471 = vpop.f32.mrf.mxu0
        %v472 = vadd.f32 0.0, %v471
        %v473 = vpop.f32.mrf.mxu0
        %474 = vmatprep.mubr.f32.mxu0 0.0
        %475 = vmatmul.mubr.f32.gmra.mxu0 %v310
        %v476 = vpop.f32.mrf.mxu0
        %v477 = vadd.f32 0.0, %v476
        %v478 = vpop.f32.mrf.mxu0
        %479 = vmatprep.mubr.f32.mxu0 0.0
        %480 = vmatmul.mubr.f32.gmra.mxu0 %v313
        %v481 = vpop.f32.mrf.mxu0
        %v482 = vadd.f32 0.0, %v481
        %v483 = vpop.f32.mrf.mxu0
        %484 = vdwg.mxu0
        %485 = vmatprep.subr.mxu0 0.0
        %486 = vmatpush1.msra.mxu0 0.0
        %487 = vmatprep.subr.mxu0 0.0
        %488 = vmatpush1.msra.mxu0 0.0
        %489 = vmatprep.subr.mxu0 0.0
        %490 = vmatpush1.msra.mxu0 0.0
        %491 = vmatprep.subr.mxu0 0.0
        %492 = vmatpush1.msra.mxu0 0.0
        %493 = vmatprep.subr.mxu0 0.0
        %494 = vmatpush1.msra.mxu0 0.0
        %495 = vmatprep.subr.mxu0 0.0
        %496 = vmatpush1.msra.mxu0 0.0
        %497 = vmatprep.subr.mxu0 0.0
        %498 = vmatpush1.msra.mxu0 0.0
        %499 = vmatprep.subr.mxu0 0.0
        %500 = vmatpush1.msra.mxu0 0.0
        %501 = vmatprep.subr.mxu0 0.0
        %502 = vmatpush1.msra.mxu0 0.0
        %503 = vmatprep.subr.mxu0 0.0
        %504 = vmatpush1.msra.mxu0 0.0
        %505 = vmatprep.subr.mxu0 0.0
        %506 = vmatpush1.msra.mxu0 0.0
        %507 = vmatprep.subr.mxu0 0.0
        %508 = vmatpush1.msra.mxu0 0.0
        %509 = vmatprep.subr.mxu0 0.0
        %510 = vmatpush1.msra.mxu0 0.0
        %511 = vmatprep.subr.mxu0 0.0
        %512 = vmatpush1.msra.mxu0 0.0
        %513 = vmatprep.subr.mxu0 0.0
        %514 = vmatpush1.msra.mxu0 %v287
        %515 = vmatprep.subr.mxu0 0.0
        %516 = vmatpush1.msra.mxu0 %v286
        %517 = vmatprep.subr.mxu0 0.0
        %518 = vmatpush2.msra.mxu0 0.0
        %519 = vmatprep.subr.mxu0 0.0
        %520 = vmatpush2.msra.mxu0 0.0
        %521 = vmatprep.subr.mxu0 0.0
        %522 = vmatpush2.msra.mxu0 0.0
        %523 = vmatprep.subr.mxu0 0.0
        %524 = vmatpush2.msra.mxu0 0.0
        %525 = vmatprep.subr.mxu0 0.0
        %526 = vmatpush2.msra.mxu0 0.0
        %527 = vmatprep.subr.mxu0 0.0
        %528 = vmatpush2.msra.mxu0 0.0
        %529 = vmatprep.subr.mxu0 0.0
        %530 = vmatpush2.msra.mxu0 0.0
        %531 = vmatprep.subr.mxu0 0.0
        %532 = vmatpush2.msra.mxu0 0.0
        %533 = vmatprep.subr.mxu0 0.0
        %534 = vmatpush2.msra.mxu0 0.0
        %535 = vmatprep.subr.mxu0 0.0
        %536 = vmatpush2.msra.mxu0 0.0
        %537 = vmatprep.subr.mxu0 0.0
        %538 = vmatpush2.msra.mxu0 0.0
        %539 = vmatprep.subr.mxu0 0.0
        %540 = vmatpush2.msra.mxu0 0.0
        %541 = vmatprep.subr.mxu0 0.0
        %542 = vmatpush2.msra.mxu0 0.0
        %543 = vmatprep.subr.mxu0 0.0
        %544 = vmatpush2.msra.mxu0 0.0
        %545 = vmatprep.subr.mxu0 0.0
        %546 = vmatpush2.msra.mxu0 0.0
        %547 = vmatprep.subr.mxu0 0.0
        %548 = vmatpush2.msra.mxu0 0.0
        %549 = vmatprep.mubr.f32.mxu0 0.0
        %550 = vmatmul.mubr.f32.gmra.mxu0 %v304
        %v551 = vpop.f32.mrf.mxu0
        %v552 = vadd.f32 0.0, %v551
        %v553 = vpop.f32.mrf.mxu0
        %554 = vmatprep.mubr.f32.mxu0 0.0
        %555 = vmatmul.mubr.f32.gmra.mxu0 %v307
        %v556 = vpop.f32.mrf.mxu0
        %v557 = vadd.f32 0.0, %v556
        %v558 = vpop.f32.mrf.mxu0
        %559 = vmatprep.mubr.f32.mxu0 0.0
        %560 = vmatmul.mubr.f32.gmra.mxu0 %v310
        %v561 = vpop.f32.mrf.mxu0
        %v562 = vadd.f32 0.0, %v561
        %v563 = vpop.f32.mrf.mxu0
        %564 = vmatprep.mubr.f32.mxu0 0.0
        %565 = vmatmul.mubr.f32.gmra.mxu0 %v313
        %v566 = vpop.f32.mrf.mxu0
        %v567 = vadd.f32 0.0, %v566
        %v568 = vpop.f32.mrf.mxu0
        %569 = vdwg.mxu0
        %570 = vmatprep.subr.mxu0 0.0
        %571 = vmatpush1.msra.mxu0 0.0
        %572 = vmatprep.subr.mxu0 0.0
        %573 = vmatpush1.msra.mxu0 0.0
        %574 = vmatprep.subr.mxu0 0.0
        %575 = vmatpush1.msra.mxu0 0.0
        %576 = vmatprep.subr.mxu0 0.0
        %577 = vmatpush1.msra.mxu0 0.0
        %578 = vmatprep.subr.mxu0 0.0
        %579 = vmatpush1.msra.mxu0 0.0
        %580 = vmatprep.subr.mxu0 0.0
        %581 = vmatpush1.msra.mxu0 0.0
        %582 = vmatprep.subr.mxu0 0.0
        %583 = vmatpush1.msra.mxu0 0.0
        %584 = vmatprep.subr.mxu0 0.0
        %585 = vmatpush1.msra.mxu0 0.0
        %586 = vmatprep.subr.mxu0 0.0
        %587 = vmatpush1.msra.mxu0 0.0
        %588 = vmatprep.subr.mxu0 0.0
        %589 = vmatpush1.msra.mxu0 0.0
        %590 = vmatprep.subr.mxu0 0.0
        %591 = vmatpush1.msra.mxu0 0.0
        %592 = vmatprep.subr.mxu0 0.0
        %593 = vmatpush1.msra.mxu0 0.0
        %594 = vmatprep.subr.mxu0 0.0
        %595 = vmatpush1.msra.mxu0 0.0
        %596 = vmatprep.subr.mxu0 0.0
        %597 = vmatpush1.msra.mxu0 0.0
        %598 = vmatprep.subr.mxu0 0.0
        %599 = vmatpush1.msra.mxu0 %v289
        %600 = vmatprep.subr.mxu0 0.0
        %601 = vmatpush1.msra.mxu0 %v288
        %602 = vmatprep.subr.mxu0 0.0
        %603 = vmatpush2.msra.mxu0 0.0
        %604 = vmatprep.subr.mxu0 0.0
        %605 = vmatpush2.msra.mxu0 0.0
        %606 = vmatprep.subr.mxu0 0.0
        %607 = vmatpush2.msra.mxu0 0.0
        %608 = vmatprep.subr.mxu0 0.0
        %609 = vmatpush2.msra.mxu0 0.0
        %610 = vmatprep.subr.mxu0 0.0
        %611 = vmatpush2.msra.mxu0 0.0
        %612 = vmatprep.subr.mxu0 0.0
        %613 = vmatpush2.msra.mxu0 0.0
        %614 = vmatprep.subr.mxu0 0.0
        %615 = vmatpush2.msra.mxu0 0.0
        %616 = vmatprep.subr.mxu0 0.0
        %617 = vmatpush2.msra.mxu0 0.0
        %618 = vmatprep.subr.mxu0 0.0
        %619 = vmatpush2.msra.mxu0 0.0
        %620 = vmatprep.subr.mxu0 0.0
        %621 = vmatpush2.msra.mxu0 0.0
        %622 = vmatprep.subr.mxu0 0.0
        %623 = vmatpush2.msra.mxu0 0.0
        %624 = vmatprep.subr.mxu0 0.0
        %625 = vmatpush2.msra.mxu0 0.0
        %626 = vmatprep.subr.mxu0 0.0
        %627 = vmatpush2.msra.mxu0 0.0
        %628 = vmatprep.subr.mxu0 0.0
        %629 = vmatpush2.msra.mxu0 0.0
        %630 = vmatprep.subr.mxu0 0.0
        %631 = vmatpush2.msra.mxu0 0.0
        %632 = vmatprep.subr.mxu0 0.0
        %633 = vmatpush2.msra.mxu0 0.0
        %634 = vmatprep.mubr.f32.mxu0 0.0
        %635 = vmatmul.mubr.f32.gmra.mxu0 %v304
        %v636 = vpop.f32.mrf.mxu0
        %v637 = vadd.f32 0.0, %v636
        %v638 = vpop.f32.mrf.mxu0
        %639 = vmatprep.mubr.f32.mxu0 0.0
        %640 = vmatmul.mubr.f32.gmra.mxu0 %v307
        %v641 = vpop.f32.mrf.mxu0
        %v642 = vadd.f32 0.0, %v641
        %v643 = vpop.f32.mrf.mxu0
        %644 = vmatprep.mubr.f32.mxu0 0.0
        %645 = vmatmul.mubr.f32.gmra.mxu0 %v310
        %v646 = vpop.f32.mrf.mxu0
        %v647 = vadd.f32 0.0, %v646
        %v648 = vpop.f32.mrf.mxu0
        %649 = vmatprep.mubr.f32.mxu0 0.0
        %650 = vmatmul.mubr.f32.gmra.mxu0 %v313
        %v651 = vpop.f32.mrf.mxu0
        %v652 = vadd.f32 0.0, %v651
        %v653 = vpop.f32.mrf.mxu0
        %654 = vdwg.mxu0
        %655 = vmatprep.subr.mxu0 0.0
        %656 = vmatpush1.msra.mxu0 0.0
        %657 = vmatprep.subr.mxu0 0.0
        %658 = vmatpush1.msra.mxu0 0.0
        %659 = vmatprep.subr.mxu0 0.0
        %660 = vmatpush1.msra.mxu0 0.0
        %661 = vmatprep.subr.mxu0 0.0
        %662 = vmatpush1.msra.mxu0 0.0
        %663 = vmatprep.subr.mxu0 0.0
        %664 = vmatpush1.msra.mxu0 0.0
        %665 = vmatprep.subr.mxu0 0.0
        %666 = vmatpush1.msra.mxu0 0.0
        %667 = vmatprep.subr.mxu0 0.0
        %668 = vmatpush1.msra.mxu0 0.0
        %669 = vmatprep.subr.mxu0 0.0
        %670 = vmatpush1.msra.mxu0 0.0
        %671 = vmatprep.subr.mxu0 0.0
        %672 = vmatpush1.msra.mxu0 0.0
        %673 = vmatprep.subr.mxu0 0.0
        %674 = vmatpush1.msra.mxu0 0.0
        %675 = vmatprep.subr.mxu0 0.0
        %676 = vmatpush1.msra.mxu0 0.0
        %677 = vmatprep.subr.mxu0 0.0
        %678 = vmatpush1.msra.mxu0 0.0
        %679 = vmatprep.subr.mxu0 0.0
        %680 = vmatpush1.msra.mxu0 0.0
        %681 = vmatprep.subr.mxu0 0.0
        %682 = vmatpush1.msra.mxu0 0.0
        %683 = vmatprep.subr.mxu0 0.0
        %684 = vmatpush1.msra.mxu0 %v291
        %685 = vmatprep.subr.mxu0 0.0
        %686 = vmatpush1.msra.mxu0 %v290
        %687 = vmatprep.subr.mxu0 0.0
        %688 = vmatpush2.msra.mxu0 0.0
        %689 = vmatprep.subr.mxu0 0.0
        %690 = vmatpush2.msra.mxu0 0.0
        %691 = vmatprep.subr.mxu0 0.0
        %692 = vmatpush2.msra.mxu0 0.0
        %693 = vmatprep.subr.mxu0 0.0
        %694 = vmatpush2.msra.mxu0 0.0
        %695 = vmatprep.subr.mxu0 0.0
        %696 = vmatpush2.msra.mxu0 0.0
        %697 = vmatprep.subr.mxu0 0.0
        %698 = vmatpush2.msra.mxu0 0.0
        %699 = vmatprep.subr.mxu0 0.0
        %700 = vmatpush2.msra.mxu0 0.0
        %701 = vmatprep.subr.mxu0 0.0
        %702 = vmatpush2.msra.mxu0 0.0
        %703 = vmatprep.subr.mxu0 0.0
        %704 = vmatpush2.msra.mxu0 0.0
        %705 = vmatprep.subr.mxu0 0.0
        %706 = vmatpush2.msra.mxu0 0.0
        %707 = vmatprep.subr.mxu0 0.0
        %708 = vmatpush2.msra.mxu0 0.0
        %709 = vmatprep.subr.mxu0 0.0
        %710 = vmatpush2.msra.mxu0 0.0
        %711 = vmatprep.subr.mxu0 0.0
        %712 = vmatpush2.msra.mxu0 0.0
        %713 = vmatprep.subr.mxu0 0.0
        %714 = vmatpush2.msra.mxu0 0.0
        %715 = vmatprep.subr.mxu0 0.0
        %716 = vmatpush2.msra.mxu0 0.0
        %717 = vmatprep.subr.mxu0 0.0
        %718 = vmatpush2.msra.mxu0 0.0
        %719 = vmatprep.mubr.f32.mxu0 0.0
        %720 = vmatmul.mubr.f32.gmra.mxu0 %v304
        %v721 = vpop.f32.mrf.mxu0
        %v722 = vadd.f32 0.0, %v721
        %v723 = vpop.f32.mrf.mxu0
        %724 = vmatprep.mubr.f32.mxu0 0.0
        %725 = vmatmul.mubr.f32.gmra.mxu0 %v307
        %v726 = vpop.f32.mrf.mxu0
        %v727 = vadd.f32 0.0, %v726
        %v728 = vpop.f32.mrf.mxu0
        %729 = vmatprep.mubr.f32.mxu0 0.0
        %730 = vmatmul.mubr.f32.gmra.mxu0 %v310
        %v731 = vpop.f32.mrf.mxu0
        %v732 = vadd.f32 0.0, %v731
        %v733 = vpop.f32.mrf.mxu0
        %734 = vmatprep.mubr.f32.mxu0 0.0
        %735 = vmatmul.mubr.f32.gmra.mxu0 %v313
        %v736 = vpop.f32.mrf.mxu0
        %v737 = vadd.f32 0.0, %v736
        %v738 = vpop.f32.mrf.mxu0
        %739 = vdwg.mxu0
        %740 = vmatprep.subr.mxu0 0.0
        %741 = vmatpush1.msra.mxu0 0.0
        %742 = vmatprep.subr.mxu0 0.0
        %743 = vmatpush1.msra.mxu0 0.0
        %744 = vmatprep.subr.mxu0 0.0
        %745 = vmatpush1.msra.mxu0 0.0
        %746 = vmatprep.subr.mxu0 0.0
        %747 = vmatpush1.msra.mxu0 0.0
        %748 = vmatprep.subr.mxu0 0.0
        %749 = vmatpush1.msra.mxu0 0.0
        %750 = vmatprep.subr.mxu0 0.0
        %751 = vmatpush1.msra.mxu0 0.0
        %752 = vmatprep.subr.mxu0 0.0
        %753 = vmatpush1.msra.mxu0 0.0
        %754 = vmatprep.subr.mxu0 0.0
        %755 = vmatpush1.msra.mxu0 0.0
        %756 = vmatprep.subr.mxu0 0.0
        %757 = vmatpush1.msra.mxu0 0.0
        %758 = vmatprep.subr.mxu0 0.0
        %759 = vmatpush1.msra.mxu0 0.0
        %760 = vmatprep.subr.mxu0 0.0
        %761 = vmatpush1.msra.mxu0 0.0
        %762 = vmatprep.subr.mxu0 0.0
        %763 = vmatpush1.msra.mxu0 0.0
        %764 = vmatprep.subr.mxu0 0.0
        %765 = vmatpush1.msra.mxu0 0.0
        %766 = vmatprep.subr.mxu0 0.0
        %767 = vmatpush1.msra.mxu0 0.0
        %768 = vmatprep.subr.mxu0 0.0
        %769 = vmatpush1.msra.mxu0 %v293
        %770 = vmatprep.subr.mxu0 0.0
        %771 = vmatpush1.msra.mxu0 %v292
        %772 = vmatprep.subr.mxu0 0.0
        %773 = vmatpush2.msra.mxu0 0.0
        %774 = vmatprep.subr.mxu0 0.0
        %775 = vmatpush2.msra.mxu0 0.0
        %776 = vmatprep.subr.mxu0 0.0
        %777 = vmatpush2.msra.mxu0 0.0
        %778 = vmatprep.subr.mxu0 0.0
        %779 = vmatpush2.msra.mxu0 0.0
        %780 = vmatprep.subr.mxu0 0.0
        %781 = vmatpush2.msra.mxu0 0.0
        %782 = vmatprep.subr.mxu0 0.0
        %783 = vmatpush2.msra.mxu0 0.0
        %784 = vmatprep.subr.mxu0 0.0
        %785 = vmatpush2.msra.mxu0 0.0
        %786 = vmatprep.subr.mxu0 0.0
        %787 = vmatpush2.msra.mxu0 0.0
        %788 = vmatprep.subr.mxu0 0.0
        %789 = vmatpush2.msra.mxu0 0.0
        %790 = vmatprep.subr.mxu0 0.0
        %791 = vmatpush2.msra.mxu0 0.0
        %792 = vmatprep.subr.mxu0 0.0
        %793 = vmatpush2.msra.mxu0 0.0
        %794 = vmatprep.subr.mxu0 0.0
        %795 = vmatpush2.msra.mxu0 0.0
        %796 = vmatprep.subr.mxu0 0.0
        %797 = vmatpush2.msra.mxu0 0.0
        %798 = vmatprep.subr.mxu0 0.0
        %799 = vmatpush2.msra.mxu0 0.0
        %800 = vmatprep.subr.mxu0 0.0
        %801 = vmatpush2.msra.mxu0 0.0
        %802 = vmatprep.subr.mxu0 0.0
        %803 = vmatpush2.msra.mxu0 0.0
        %804 = vmatprep.mubr.f32.mxu0 0.0
        %805 = vmatmul.mubr.f32.gmra.mxu0 %v304
        %v806 = vpop.f32.mrf.mxu0
        %v807 = vadd.f32 0.0, %v806
        %v808 = vpop.f32.mrf.mxu0
        %809 = vmatprep.mubr.f32.mxu0 0.0
        %810 = vmatmul.mubr.f32.gmra.mxu0 %v307
        %v811 = vpop.f32.mrf.mxu0
        %v812 = vadd.f32 0.0, %v811
        %v813 = vpop.f32.mrf.mxu0
        %814 = vmatprep.mubr.f32.mxu0 0.0
        %815 = vmatmul.mubr.f32.gmra.mxu0 %v310
        %v816 = vpop.f32.mrf.mxu0
        %v817 = vadd.f32 0.0, %v816
        %v818 = vpop.f32.mrf.mxu0
        %819 = vmatprep.mubr.f32.mxu0 0.0
        %820 = vmatmul.mubr.f32.gmra.mxu0 %v313
        %v821 = vpop.f32.mrf.mxu0
        %v822 = vadd.f32 0.0, %v821
        %v823 = vpop.f32.mrf.mxu0
        %824 = vdwg.mxu0
        %825 = vmatprep.subr.mxu0 0.0
        %826 = vmatpush1.msra.mxu0 0.0
        %827 = vmatprep.subr.mxu0 0.0
        %828 = vmatpush1.msra.mxu0 0.0
        %829 = vmatprep.subr.mxu0 0.0
        %830 = vmatpush1.msra.mxu0 0.0
        %831 = vmatprep.subr.mxu0 0.0
        %832 = vmatpush1.msra.mxu0 0.0
        %833 = vmatprep.subr.mxu0 0.0
        %834 = vmatpush1.msra.mxu0 0.0
        %835 = vmatprep.subr.mxu0 0.0
        %836 = vmatpush1.msra.mxu0 0.0
        %837 = vmatprep.subr.mxu0 0.0
        %838 = vmatpush1.msra.mxu0 0.0
        %839 = vmatprep.subr.mxu0 0.0
        %840 = vmatpush1.msra.mxu0 0.0
        %841 = vmatprep.subr.mxu0 0.0
        %842 = vmatpush1.msra.mxu0 0.0
        %843 = vmatprep.subr.mxu0 0.0
        %844 = vmatpush1.msra.mxu0 0.0
        %845 = vmatprep.subr.mxu0 0.0
        %846 = vmatpush1.msra.mxu0 0.0
        %847 = vmatprep.subr.mxu0 0.0
        %848 = vmatpush1.msra.mxu0 0.0
        %849 = vmatprep.subr.mxu0 0.0
        %850 = vmatpush1.msra.mxu0 0.0
        %851 = vmatprep.subr.mxu0 0.0
        %852 = vmatpush1.msra.mxu0 0.0
        %853 = vmatprep.subr.mxu0 0.0
        %854 = vmatpush1.msra.mxu0 %v295
        %855 = vmatprep.subr.mxu0 0.0
        %856 = vmatpush1.msra.mxu0 %v294
        %857 = vmatprep.subr.mxu0 0.0
        %858 = vmatpush2.msra.mxu0 0.0
        %859 = vmatprep.subr.mxu0 0.0
        %860 = vmatpush2.msra.mxu0 0.0
        %861 = vmatprep.subr.mxu0 0.0
        %862 = vmatpush2.msra.mxu0 0.0
        %863 = vmatprep.subr.mxu0 0.0
        %864 = vmatpush2.msra.mxu0 0.0
        %865 = vmatprep.subr.mxu0 0.0
        %866 = vmatpush2.msra.mxu0 0.0
        %867 = vmatprep.subr.mxu0 0.0
        %868 = vmatpush2.msra.mxu0 0.0
        %869 = vmatprep.subr.mxu0 0.0
        %870 = vmatpush2.msra.mxu0 0.0
        %871 = vmatprep.subr.mxu0 0.0
        %872 = vmatpush2.msra.mxu0 0.0
        %873 = vmatprep.subr.mxu0 0.0
        %874 = vmatpush2.msra.mxu0 0.0
        %875 = vmatprep.subr.mxu0 0.0
        %876 = vmatpush2.msra.mxu0 0.0
        %877 = vmatprep.subr.mxu0 0.0
        %878 = vmatpush2.msra.mxu0 0.0
        %879 = vmatprep.subr.mxu0 0.0
        %880 = vmatpush2.msra.mxu0 0.0
        %881 = vmatprep.subr.mxu0 0.0
        %882 = vmatpush2.msra.mxu0 0.0
        %883 = vmatprep.subr.mxu0 0.0
        %884 = vmatpush2.msra.mxu0 0.0
        %885 = vmatprep.subr.mxu0 0.0
        %886 = vmatpush2.msra.mxu0 0.0
        %887 = vmatprep.subr.mxu0 0.0
        %888 = vmatpush2.msra.mxu0 0.0
        %889 = vmatprep.mubr.f32.mxu0 0.0
        %890 = vmatmul.mubr.f32.gmra.mxu0 %v304
        %v891 = vpop.f32.mrf.mxu0
        %v892 = vadd.f32 0.0, %v891
        %v893 = vpop.f32.mrf.mxu0
        %894 = vmatprep.mubr.f32.mxu0 0.0
        %895 = vmatmul.mubr.f32.gmra.mxu0 %v307
        %v896 = vpop.f32.mrf.mxu0
        %v897 = vadd.f32 0.0, %v896
        %v898 = vpop.f32.mrf.mxu0
        %899 = vmatprep.mubr.f32.mxu0 0.0
        %900 = vmatmul.mubr.f32.gmra.mxu0 %v310
        %v901 = vpop.f32.mrf.mxu0
        %v902 = vadd.f32 0.0, %v901
        %v903 = vpop.f32.mrf.mxu0
        %904 = vmatprep.mubr.f32.mxu0 0.0
        %905 = vmatmul.mubr.f32.gmra.mxu0 %v313
        %v906 = vpop.f32.mrf.mxu0
        %v907 = vadd.f32 0.0, %v906
        %v908 = vpop.f32.mrf.mxu0
        %909 = vdwg.mxu0
        %910 = vmatprep.subr.mxu0 0.0
        %911 = vmatpush1.msra.mxu0 0.0
        %912 = vmatprep.subr.mxu0 0.0
        %913 = vmatpush1.msra.mxu0 0.0
        %914 = vmatprep.subr.mxu0 0.0
        %915 = vmatpush1.msra.mxu0 0.0
        %916 = vmatprep.subr.mxu0 0.0
        %917 = vmatpush1.msra.mxu0 0.0
        %918 = vmatprep.subr.mxu0 0.0
        %919 = vmatpush1.msra.mxu0 0.0
        %920 = vmatprep.subr.mxu0 0.0
        %921 = vmatpush1.msra.mxu0 0.0
        %922 = vmatprep.subr.mxu0 0.0
        %923 = vmatpush1.msra.mxu0 0.0
        %924 = vmatprep.subr.mxu0 0.0
        %925 = vmatpush1.msra.mxu0 0.0
        %926 = vmatprep.subr.mxu0 0.0
        %927 = vmatpush1.msra.mxu0 0.0
        %928 = vmatprep.subr.mxu0 0.0
        %929 = vmatpush1.msra.mxu0 0.0
        %930 = vmatprep.subr.mxu0 0.0
        %931 = vmatpush1.msra.mxu0 0.0
        %932 = vmatprep.subr.mxu0 0.0
        %933 = vmatpush1.msra.mxu0 0.0
        %934 = vmatprep.subr.mxu0 0.0
        %935 = vmatpush1.msra.mxu0 0.0
        %936 = vmatprep.subr.mxu0 0.0
        %937 = vmatpush1.msra.mxu0 0.0
        %938 = vmatprep.subr.mxu0 0.0
        %939 = vmatpush1.msra.mxu0 %v297
        %940 = vmatprep.subr.mxu0 0.0
        %941 = vmatpush1.msra.mxu0 %v296
        %942 = vmatprep.subr.mxu0 0.0
        %943 = vmatpush2.msra.mxu0 0.0
        %944 = vmatprep.subr.mxu0 0.0
        %945 = vmatpush2.msra.mxu0 0.0
        %946 = vmatprep.subr.mxu0 0.0
        %947 = vmatpush2.msra.mxu0 0.0
        %948 = vmatprep.subr.mxu0 0.0
        %949 = vmatpush2.msra.mxu0 0.0
        %950 = vmatprep.subr.mxu0 0.0
        %951 = vmatpush2.msra.mxu0 0.0
        %952 = vmatprep.subr.mxu0 0.0
        %953 = vmatpush2.msra.mxu0 0.0
        %954 = vmatprep.subr.mxu0 0.0
        %955 = vmatpush2.msra.mxu0 0.0
        %956 = vmatprep.subr.mxu0 0.0
        %957 = vmatpush2.msra.mxu0 0.0
        %958 = vmatprep.subr.mxu0 0.0
        %959 = vmatpush2.msra.mxu0 0.0
        %960 = vmatprep.subr.mxu0 0.0
        %961 = vmatpush2.msra.mxu0 0.0
        %962 = vmatprep.subr.mxu0 0.0
        %963 = vmatpush2.msra.mxu0 0.0
        %964 = vmatprep.subr.mxu0 0.0
        %965 = vmatpush2.msra.mxu0 0.0
        %966 = vmatprep.subr.mxu0 0.0
        %967 = vmatpush2.msra.mxu0 0.0
        %968 = vmatprep.subr.mxu0 0.0
        %969 = vmatpush2.msra.mxu0 0.0
        %970 = vmatprep.subr.mxu0 0.0
        %971 = vmatpush2.msra.mxu0 0.0
        %972 = vmatprep.subr.mxu0 0.0
        %973 = vmatpush2.msra.mxu0 0.0
        %974 = vmatprep.mubr.f32.mxu0 0.0
        %975 = vmatmul.mubr.f32.gmra.mxu0 %v304
        %v976 = vpop.f32.mrf.mxu0
        %v977 = vadd.f32 0.0, %v976
        %v978 = vpop.f32.mrf.mxu0
        %979 = vmatprep.mubr.f32.mxu0 0.0
        %980 = vmatmul.mubr.f32.gmra.mxu0 %v307
        %v981 = vpop.f32.mrf.mxu0
        %v982 = vadd.f32 0.0, %v981
        %v983 = vpop.f32.mrf.mxu0
        %984 = vmatprep.mubr.f32.mxu0 0.0
        %985 = vmatmul.mubr.f32.gmra.mxu0 %v310
        %v986 = vpop.f32.mrf.mxu0
        %v987 = vadd.f32 0.0, %v986
        %v988 = vpop.f32.mrf.mxu0
        %989 = vmatprep.mubr.f32.mxu0 0.0
        %990 = vmatmul.mubr.f32.gmra.mxu0 %v313
        %v991 = vpop.f32.mrf.mxu0
        %v992 = vadd.f32 0.0, %v991
        %v993 = vpop.f32.mrf.mxu0
        %994 = vdwg.mxu0
        %v995 = vld [vmem:[%s2] sm:$0xff]
        %v996 = vld [vmem:[%s2 + $0x8] sm:$0xff]
        %v998 = vsel %vm302, %v382, 0
        %v1001 = vsel %vm302, %v387, 0
        %v1004 = vsel %vm302, %v392, 0
        %v1007 = vsel %vm302, %v397, 0
        %v1010 = vsel %vm302, %v467, 0
        %v1013 = vsel %vm302, %v472, 0
        %v1016 = vsel %vm302, %v477, 0
        %v1019 = vsel %vm302, %v482, 0
        %v1022 = vsel %vm302, %v552, 0
        %v1025 = vsel %vm302, %v557, 0
        %v1028 = vsel %vm302, %v562, 0
        %v1031 = vsel %vm302, %v567, 0
        %v1034 = vsel %vm302, %v637, 0
        %v1037 = vsel %vm302, %v642, 0
        %v1040 = vsel %vm302, %v647, 0
        %v1043 = vsel %vm302, %v652, 0
        %v1046 = vsel %vm302, %v722, 0
        %v1049 = vsel %vm302, %v727, 0
        %v1052 = vsel %vm302, %v732, 0
        %v1055 = vsel %vm302, %v737, 0
        %v1058 = vsel %vm302, %v807, 0
        %v1061 = vsel %vm302, %v812, 0
        %v1064 = vsel %vm302, %v817, 0
        %v1067 = vsel %vm302, %v822, 0
        %v1070 = vsel %vm302, %v892, 0
        %v1073 = vsel %vm302, %v897, 0
        %v1076 = vsel %vm302, %v902, 0
        %v1079 = vsel %vm302, %v907, 0
        %v1082 = vsel %vm302, %v977, 0
        %v1085 = vsel %vm302, %v982, 0
        %v1088 = vsel %vm302, %v987, 0
        %v1091 = vsel %vm302, %v992, 0
        %1093 = vmatprep.subr.mxu0 0.0
        %1094 = vmatpush1.msra.mxu0 0.0
        %1095 = vmatprep.subr.mxu0 0.0
        %1096 = vmatpush1.msra.mxu0 0.0
        %1097 = vmatprep.subr.mxu0 0.0
        %1098 = vmatpush1.msra.mxu0 0.0
        %1099 = vmatprep.subr.mxu0 0.0
        %1100 = vmatpush1.msra.mxu0 0.0
        %1101 = vmatprep.subr.mxu0 0.0
        %1102 = vmatpush1.msra.mxu0 0.0
        %1103 = vmatprep.subr.mxu0 0.0
        %1104 = vmatpush1.msra.mxu0 0.0
        %1105 = vmatprep.subr.mxu0 0.0
        %1106 = vmatpush1.msra.mxu0 0.0
        %1107 = vmatprep.subr.mxu0 0.0
        %1108 = vmatpush1.msra.mxu0 0.0
        %1109 = vmatprep.subr.mxu0 0.0
        %1110 = vmatpush1.msra.mxu0 0.0
        %1111 = vmatprep.subr.mxu0 0.0
        %1112 = vmatpush1.msra.mxu0 0.0
        %1113 = vmatprep.subr.mxu0 0.0
        %1114 = vmatpush1.msra.mxu0 0.0
        %1115 = vmatprep.subr.mxu0 0.0
        %1116 = vmatpush1.msra.mxu0 0.0
        %1117 = vmatprep.subr.mxu0 0.0
        %1118 = vmatpush1.msra.mxu0 0.0
        %1119 = vmatprep.subr.mxu0 0.0
        %1120 = vmatpush1.msra.mxu0 0.0
        %1121 = vmatprep.subr.mxu0 0.0
        %1122 = vmatpush1.msra.mxu0 %v996
        %1123 = vmatprep.subr.mxu0 0.0
        %1124 = vmatpush1.msra.mxu0 %v995
        %1125 = vmatprep.subr.mxu0 0.0
        %1126 = vmatpush2.msra.mxu0 0.0
        %1127 = vmatprep.subr.mxu0 0.0
        %1128 = vmatpush2.msra.mxu0 0.0
        %1129 = vmatprep.subr.mxu0 0.0
        %1130 = vmatpush2.msra.mxu0 0.0
        %1131 = vmatprep.subr.mxu0 0.0
        %1132 = vmatpush2.msra.mxu0 0.0
        %1133 = vmatprep.subr.mxu0 0.0
        %1134 = vmatpush2.msra.mxu0 0.0
        %1135 = vmatprep.subr.mxu0 0.0
        %1136 = vmatpush2.msra.mxu0 0.0
        %1137 = vmatprep.subr.mxu0 0.0
        %1138 = vmatpush2.msra.mxu0 0.0
        %1139 = vmatprep.subr.mxu0 0.0
        %1140 = vmatpush2.msra.mxu0 0.0
        %1141 = vmatprep.subr.mxu0 0.0
        %1142 = vmatpush2.msra.mxu0 0.0
        %1143 = vmatprep.subr.mxu0 0.0
        %1144 = vmatpush2.msra.mxu0 0.0
        %1145 = vmatprep.subr.mxu0 0.0
        %1146 = vmatpush2.msra.mxu0 0.0
        %1147 = vmatprep.subr.mxu0 0.0
        %1148 = vmatpush2.msra.mxu0 0.0
        %1149 = vmatprep.subr.mxu0 0.0
        %1150 = vmatpush2.msra.mxu0 0.0
        %1151 = vmatprep.subr.mxu0 0.0
        %1152 = vmatpush2.msra.mxu0 0.0
        %1153 = vmatprep.subr.mxu0 0.0
        %1154 = vmatpush2.msra.mxu0 0.0
        %1155 = vmatprep.subr.mxu0 0.0
        %1156 = vmatpush2.msra.mxu0 0.0
        %1157 = vmatprep.mubr.f32.mxu0 0.0
        %1158 = vmatmul.mubr.f32.gmra.mxu0 %v998
        %v1159 = vpop.f32.mrf.mxu0
        %v1160 = vadd.f32 0.0, %v1159
        %v1161 = vpop.f32.mrf.mxu0
        %1162 = vmatprep.mubr.f32.mxu0 0.0
        %1163 = vmatmul.mubr.f32.gmra.mxu0 %v1001
        %v1164 = vpop.f32.mrf.mxu0
        %v1165 = vadd.f32 0.0, %v1164
        %v1166 = vpop.f32.mrf.mxu0
        %1167 = vmatprep.mubr.f32.mxu0 0.0
        %1168 = vmatmul.mubr.f32.gmra.mxu0 %v1004
        %v1169 = vpop.f32.mrf.mxu0
        %v1170 = vadd.f32 0.0, %v1169
        %v1171 = vpop.f32.mrf.mxu0
        %1172 = vmatprep.mubr.f32.mxu0 0.0
        %1173 = vmatmul.mubr.f32.gmra.mxu0 %v1007
        %v1174 = vpop.f32.mrf.mxu0
        %v1175 = vadd.f32 0.0, %v1174
        %v1176 = vpop.f32.mrf.mxu0
        %1177 = vmatprep.mubr.f32.mxu0 0.0
        %1178 = vmatmul.mubr.f32.gmra.mxu0 %v1010
        %v1179 = vpop.f32.mrf.mxu0
        %v1180 = vadd.f32 0.0, %v1179
        %v1181 = vpop.f32.mrf.mxu0
        %1182 = vmatprep.mubr.f32.mxu0 0.0
        %1183 = vmatmul.mubr.f32.gmra.mxu0 %v1013
        %v1184 = vpop.f32.mrf.mxu0
        %v1185 = vadd.f32 0.0, %v1184
        %v1186 = vpop.f32.mrf.mxu0
        %1187 = vmatprep.mubr.f32.mxu0 0.0
        %1188 = vmatmul.mubr.f32.gmra.mxu0 %v1016
        %v1189 = vpop.f32.mrf.mxu0
        %v1190 = vadd.f32 0.0, %v1189
        %v1191 = vpop.f32.mrf.mxu0
        %1192 = vmatprep.mubr.f32.mxu0 0.0
        %1193 = vmatmul.mubr.f32.gmra.mxu0 %v1019
        %v1194 = vpop.f32.mrf.mxu0
        %v1195 = vadd.f32 0.0, %v1194
        %v1196 = vpop.f32.mrf.mxu0
        %1197 = vmatprep.mubr.f32.mxu0 0.0
        %1198 = vmatmul.mubr.f32.gmra.mxu0 %v1022
        %v1199 = vpop.f32.mrf.mxu0
        %v1200 = vadd.f32 0.0, %v1199
        %v1201 = vpop.f32.mrf.mxu0
        %1202 = vmatprep.mubr.f32.mxu0 0.0
        %1203 = vmatmul.mubr.f32.gmra.mxu0 %v1025
        %v1204 = vpop.f32.mrf.mxu0
        %v1205 = vadd.f32 0.0, %v1204
        %v1206 = vpop.f32.mrf.mxu0
        %1207 = vmatprep.mubr.f32.mxu0 0.0
        %1208 = vmatmul.mubr.f32.gmra.mxu0 %v1028
        %v1209 = vpop.f32.mrf.mxu0
        %v1210 = vadd.f32 0.0, %v1209
        %v1211 = vpop.f32.mrf.mxu0
        %1212 = vmatprep.mubr.f32.mxu0 0.0
        %1213 = vmatmul.mubr.f32.gmra.mxu0 %v1031
        %v1214 = vpop.f32.mrf.mxu0
        %v1215 = vadd.f32 0.0, %v1214
        %v1216 = vpop.f32.mrf.mxu0
        %1217 = vmatprep.mubr.f32.mxu0 0.0
        %1218 = vmatmul.mubr.f32.gmra.mxu0 %v1034
        %v1219 = vpop.f32.mrf.mxu0
        %v1220 = vadd.f32 0.0, %v1219
        %v1221 = vpop.f32.mrf.mxu0
        %1222 = vmatprep.mubr.f32.mxu0 0.0
        %1223 = vmatmul.mubr.f32.gmra.mxu0 %v1037
        %v1224 = vpop.f32.mrf.mxu0
        %v1225 = vadd.f32 0.0, %v1224
        %v1226 = vpop.f32.mrf.mxu0
        %1227 = vmatprep.mubr.f32.mxu0 0.0
        %1228 = vmatmul.mubr.f32.gmra.mxu0 %v1040
        %v1229 = vpop.f32.mrf.mxu0
        %v1230 = vadd.f32 0.0, %v1229
        %v1231 = vpop.f32.mrf.mxu0
        %1232 = vmatprep.mubr.f32.mxu0 0.0
        %1233 = vmatmul.mubr.f32.gmra.mxu0 %v1043
        %v1234 = vpop.f32.mrf.mxu0
        %v1235 = vadd.f32 0.0, %v1234
        %v1236 = vpop.f32.mrf.mxu0
        %1237 = vmatprep.mubr.f32.mxu0 0.0
        %1238 = vmatmul.mubr.f32.gmra.mxu0 %v1046
        %v1239 = vpop.f32.mrf.mxu0
        %v1240 = vadd.f32 0.0, %v1239
        %v1241 = vpop.f32.mrf.mxu0
        %1242 = vmatprep.mubr.f32.mxu0 0.0
        %1243 = vmatmul.mubr.f32.gmra.mxu0 %v1049
        %v1244 = vpop.f32.mrf.mxu0
        %v1245 = vadd.f32 0.0, %v1244
        %v1246 = vpop.f32.mrf.mxu0
        %1247 = vmatprep.mubr.f32.mxu0 0.0
        %1248 = vmatmul.mubr.f32.gmra.mxu0 %v1052
        %v1249 = vpop.f32.mrf.mxu0
        %v1250 = vadd.f32 0.0, %v1249
        %v1251 = vpop.f32.mrf.mxu0
        %1252 = vmatprep.mubr.f32.mxu0 0.0
        %1253 = vmatmul.mubr.f32.gmra.mxu0 %v1055
        %v1254 = vpop.f32.mrf.mxu0
        %v1255 = vadd.f32 0.0, %v1254
        %v1256 = vpop.f32.mrf.mxu0
        %1257 = vmatprep.mubr.f32.mxu0 0.0
        %1258 = vmatmul.mubr.f32.gmra.mxu0 %v1058
        %v1259 = vpop.f32.mrf.mxu0
        %v1260 = vadd.f32 0.0, %v1259
        %v1261 = vpop.f32.mrf.mxu0
        %1262 = vmatprep.mubr.f32.mxu0 0.0
        %1263 = vmatmul.mubr.f32.gmra.mxu0 %v1061
        %v1264 = vpop.f32.mrf.mxu0
        %v1265 = vadd.f32 0.0, %v1264
        %v1266 = vpop.f32.mrf.mxu0
        %1267 = vmatprep.mubr.f32.mxu0 0.0
        %1268 = vmatmul.mubr.f32.gmra.mxu0 %v1064
        %v1269 = vpop.f32.mrf.mxu0
        %v1270 = vadd.f32 0.0, %v1269
        %v1271 = vpop.f32.mrf.mxu0
        %1272 = vmatprep.mubr.f32.mxu0 0.0
        %1273 = vmatmul.mubr.f32.gmra.mxu0 %v1067
        %v1274 = vpop.f32.mrf.mxu0
        %v1275 = vadd.f32 0.0, %v1274
        %v1276 = vpop.f32.mrf.mxu0
        %1277 = vmatprep.mubr.f32.mxu0 0.0
        %1278 = vmatmul.mubr.f32.gmra.mxu0 %v1070
        %v1279 = vpop.f32.mrf.mxu0
        %v1280 = vadd.f32 0.0, %v1279
        %v1281 = vpop.f32.mrf.mxu0
        %1282 = vmatprep.mubr.f32.mxu0 0.0
        %1283 = vmatmul.mubr.f32.gmra.mxu0 %v1073
        %v1284 = vpop.f32.mrf.mxu0
        %v1285 = vadd.f32 0.0, %v1284
        %v1286 = vpop.f32.mrf.mxu0
        %1287 = vmatprep.mubr.f32.mxu0 0.0
        %1288 = vmatmul.mubr.f32.gmra.mxu0 %v1076
        %v1289 = vpop.f32.mrf.mxu0
        %v1290 = vadd.f32 0.0, %v1289
        %v1291 = vpop.f32.mrf.mxu0
        %1292 = vmatprep.mubr.f32.mxu0 0.0
        %1293 = vmatmul.mubr.f32.gmra.mxu0 %v1079
        %v1294 = vpop.f32.mrf.mxu0
        %v1295 = vadd.f32 0.0, %v1294
        %v1296 = vpop.f32.mrf.mxu0
        %1297 = vmatprep.mubr.f32.mxu0 0.0
        %1298 = vmatmul.mubr.f32.gmra.mxu0 %v1082
        %v1299 = vpop.f32.mrf.mxu0
        %v1300 = vadd.f32 0.0, %v1299
        %v1301 = vpop.f32.mrf.mxu0
        %1302 = vmatprep.mubr.f32.mxu0 0.0
        %1303 = vmatmul.mubr.f32.gmra.mxu0 %v1085
        %v1304 = vpop.f32.mrf.mxu0
        %v1305 = vadd.f32 0.0, %v1304
        %v1306 = vpop.f32.mrf.mxu0
        %1307 = vmatprep.mubr.f32.mxu0 0.0
        %1308 = vmatmul.mubr.f32.gmra.mxu0 %v1088
        %v1309 = vpop.f32.mrf.mxu0
        %v1310 = vadd.f32 0.0, %v1309
        %v1311 = vpop.f32.mrf.mxu0
        %1312 = vmatprep.mubr.f32.mxu0 0.0
        %1313 = vmatmul.mubr.f32.gmra.mxu0 %v1091
        %v1314 = vpop.f32.mrf.mxu0
        %v1315 = vadd.f32 0.0, %v1314
        %v1316 = vpop.f32.mrf.mxu0
        %1317 = vdwg.mxu0
        %v1318 = vmax.f32 %v1160, 0.0
        %v1319 = vmax.f32 %v1165, 0.0
        %v1320 = vmax.f32 %v1170, 0.0
        %v1321 = vmax.f32 %v1175, 0.0
        %v1322 = vmax.f32 %v1180, 0.0
        %v1323 = vmax.f32 %v1185, 0.0
        %v1324 = vmax.f32 %v1190, 0.0
        %v1325 = vmax.f32 %v1195, 0.0
        %v1326 = vmax.f32 %v1200, 0.0
        %v1327 = vmax.f32 %v1205, 0.0
        %v1328 = vmax.f32 %v1210, 0.0
        %v1329 = vmax.f32 %v1215, 0.0
        %v1330 = vmax.f32 %v1220, 0.0
        %v1331 = vmax.f32 %v1225, 0.0
        %v1332 = vmax.f32 %v1230, 0.0
        %v1333 = vmax.f32 %v1235, 0.0
        %v1334 = vmax.f32 %v1240, 0.0
        %v1335 = vmax.f32 %v1245, 0.0
        %v1336 = vmax.f32 %v1250, 0.0
        %v1337 = vmax.f32 %v1255, 0.0
        %v1338 = vmax.f32 %v1260, 0.0
        %v1339 = vmax.f32 %v1265, 0.0
        %v1340 = vmax.f32 %v1270, 0.0
        %v1341 = vmax.f32 %v1275, 0.0
        %v1342 = vmax.f32 %v1280, 0.0
        %v1343 = vmax.f32 %v1285, 0.0
        %v1344 = vmax.f32 %v1290, 0.0
        %v1345 = vmax.f32 %v1295, 0.0
        %v1346 = vmax.f32 %v1300, 0.0
        %v1347 = vmax.f32 %v1305, 0.0
        %v1348 = vmax.f32 %v1310, 0.0
        %v1349 = vmax.f32 %v1315, 0.0
        %v1350 = vld [vmem:[%s3] sm:$0xff]
        %v1351 = vld [vmem:[%s4] sm:$0x1]
        %v1352 = vld [vmem:[%s4 + $0x1] sm:$0x1]
        %v1353 = vld [vmem:[%s4 + $0x2] sm:$0x1]
        %v1354 = vld [vmem:[%s4 + $0x3] sm:$0x1]
        %v1355 = vld [vmem:[%s4 + $0x4] sm:$0x1]
        %v1356 = vld [vmem:[%s4 + $0x5] sm:$0x1]
        %v1357 = vld [vmem:[%s4 + $0x6] sm:$0x1]
        %v1358 = vld [vmem:[%s4 + $0x7] sm:$0x1]
        %v1367 = vlaneseq
        %v1368 = vshrl.u32 %v1367, 7
        %v1369 = vsub.s32 0, %v1368
        %v1370 = vrot.slane %v1351, %v1369
        %v1371 = vlaneseq
        %v1372 = vshrl.u32 %v1371, 7
        %v1373 = vsub.s32 0, %v1372
        %v1374 = vrot.slane %v1352, %v1373
        %v1375 = vlaneseq
        %v1376 = vshrl.u32 %v1375, 7
        %v1377 = vsub.s32 0, %v1376
        %v1378 = vrot.slane %v1353, %v1377
        %v1379 = vlaneseq
        %v1380 = vshrl.u32 %v1379, 7
        %v1381 = vsub.s32 0, %v1380
        %v1382 = vrot.slane %v1354, %v1381
        %v1383 = vlaneseq
        %v1384 = vshrl.u32 %v1383, 7
        %v1385 = vsub.s32 0, %v1384
        %v1386 = vrot.slane %v1355, %v1385
        %v1387 = vlaneseq
        %v1388 = vshrl.u32 %v1387, 7
        %v1389 = vsub.s32 0, %v1388
        %v1390 = vrot.slane %v1356, %v1389
        %v1391 = vlaneseq
        %v1392 = vshrl.u32 %v1391, 7
        %v1393 = vsub.s32 0, %v1392
        %v1394 = vrot.slane %v1357, %v1393
        %v1395 = vlaneseq
        %v1396 = vshrl.u32 %v1395, 7
        %v1397 = vsub.s32 0, %v1396
        %v1398 = vrot.slane %v1358, %v1397
        %1399 = vset.pattern.permute.xlu0 0
        %1400 = vperm.xlu0 %1399, %v1370
        %v1401 = vpop.permute.xlu0 %1400
        %1403 = vset.pattern.permute.xlu0 0
        %1404 = vperm.xlu0 %1403, %v1374
        %v1405 = vpop.permute.xlu0 %1404
        %1407 = vset.pattern.permute.xlu0 0
        %1408 = vperm.xlu0 %1407, %v1378
        %v1409 = vpop.permute.xlu0 %1408
        %1411 = vset.pattern.permute.xlu0 0
        %1412 = vperm.xlu0 %1411, %v1382
        %v1413 = vpop.permute.xlu0 %1412
        %1415 = vset.pattern.permute.xlu0 0
        %1416 = vperm.xlu0 %1415, %v1386
        %v1417 = vpop.permute.xlu0 %1416
        %1419 = vset.pattern.permute.xlu0 0
        %1420 = vperm.xlu0 %1419, %v1390
        %v1421 = vpop.permute.xlu0 %1420
        %1423 = vset.pattern.permute.xlu0 0
        %1424 = vperm.xlu0 %1423, %v1394
        %v1425 = vpop.permute.xlu0 %1424
        %1427 = vset.pattern.permute.xlu0 0
        %1428 = vperm.xlu0 %1427, %v1398
        %v1429 = vpop.permute.xlu0 %1428
        %v1431 = vcombine.low %v1318, %v1326
        %v1432 = vcombine.high %v1318, %v1326
        %v1434 = vunpack.c.l.s4 1983009808
        %v1435 = vunpack.c.0.s8 %v1434
        %v1436 = vlaneseq
        %v1437 = vshrl.u32 %v1436, 7
        %v1438 = vsub.s32 %v1435, %v1437
        %v1439 = vrot.slane %v1431, %v1438
        %v1441 = vunpack.c.l.s4 1983009808
        %v1442 = vunpack.c.0.s8 %v1441
        %v1443 = vlaneseq
        %v1444 = vshrl.u32 %v1443, 7
        %v1445 = vsub.s32 %v1442, %v1444
        %v1446 = vrot.slane %v1432, %v1445
        %v1447 = vcombine.low %v1322, %v1330
        %v1448 = vcombine.high %v1322, %v1330
        %v1450 = vunpack.c.l.s4 1983009808
        %v1451 = vunpack.c.0.s8 %v1450
        %v1452 = vlaneseq
        %v1453 = vshrl.u32 %v1452, 7
        %v1454 = vsub.s32 %v1451, %v1453
        %v1455 = vrot.slane %v1447, %v1454
        %v1457 = vunpack.c.l.s4 1983009808
        %v1458 = vunpack.c.0.s8 %v1457
        %v1459 = vlaneseq
        %v1460 = vshrl.u32 %v1459, 7
        %v1461 = vsub.s32 %v1458, %v1460
        %v1462 = vrot.slane %v1448, %v1461
        %v1463 = vcombine.low %v1334, %v1342
        %v1464 = vcombine.high %v1334, %v1342
        %v1466 = vunpack.c.l.s4 1983009808
        %v1467 = vunpack.c.0.s8 %v1466
        %v1468 = vlaneseq
        %v1469 = vshrl.u32 %v1468, 7
        %v1470 = vsub.s32 %v1467, %v1469
        %v1471 = vrot.slane %v1463, %v1470
        %v1473 = vunpack.c.l.s4 1983009808
        %v1474 = vunpack.c.0.s8 %v1473
        %v1475 = vlaneseq
        %v1476 = vshrl.u32 %v1475, 7
        %v1477 = vsub.s32 %v1474, %v1476
        %v1478 = vrot.slane %v1464, %v1477
        %v1479 = vcombine.low %v1338, %v1346
        %v1480 = vcombine.high %v1338, %v1346
        %v1482 = vunpack.c.l.s4 1983009808
        %v1483 = vunpack.c.0.s8 %v1482
        %v1484 = vlaneseq
        %v1485 = vshrl.u32 %v1484, 7
        %v1486 = vsub.s32 %v1483, %v1485
        %v1487 = vrot.slane %v1479, %v1486
        %v1489 = vunpack.c.l.s4 1983009808
        %v1490 = vunpack.c.0.s8 %v1489
        %v1491 = vlaneseq
        %v1492 = vshrl.u32 %v1491, 7
        %v1493 = vsub.s32 %v1490, %v1492
        %v1494 = vrot.slane %v1480, %v1493
        %v1495 = vcombine.low %v1439, %v1455
        %v1496 = vcombine.high %v1439, %v1455
        %v1498 = vunpack.c.l.s4 1934713408
        %v1499 = vunpack.c.0.s8 %v1498
        %v1500 = vlaneseq
        %v1501 = vshrl.u32 %v1500, 7
        %v1502 = vsub.s32 %v1499, %v1501
        %v1503 = vrot.slane %v1495, %v1502
        %v1505 = vunpack.c.l.s4 1934713408
        %v1506 = vunpack.c.0.s8 %v1505
        %v1507 = vlaneseq
        %v1508 = vshrl.u32 %v1507, 7
        %v1509 = vsub.s32 %v1506, %v1508
        %v1510 = vrot.slane %v1496, %v1509
        %v1511 = vcombine.low %v1446, %v1462
        %v1512 = vcombine.high %v1446, %v1462
        %v1514 = vunpack.c.l.s4 1934713408
        %v1515 = vunpack.c.0.s8 %v1514
        %v1516 = vlaneseq
        %v1517 = vshrl.u32 %v1516, 7
        %v1518 = vsub.s32 %v1515, %v1517
        %v1519 = vrot.slane %v1511, %v1518
        %v1521 = vunpack.c.l.s4 1934713408
        %v1522 = vunpack.c.0.s8 %v1521
        %v1523 = vlaneseq
        %v1524 = vshrl.u32 %v1523, 7
        %v1525 = vsub.s32 %v1522, %v1524
        %v1526 = vrot.slane %v1512, %v1525
        %v1527 = vcombine.low %v1471, %v1487
        %v1528 = vcombine.high %v1471, %v1487
        %v1530 = vunpack.c.l.s4 1934713408
        %v1531 = vunpack.c.0.s8 %v1530
        %v1532 = vlaneseq
        %v1533 = vshrl.u32 %v1532, 7
        %v1534 = vsub.s32 %v1531, %v1533
        %v1535 = vrot.slane %v1527, %v1534
        %v1537 = vunpack.c.l.s4 1934713408
        %v1538 = vunpack.c.0.s8 %v1537
        %v1539 = vlaneseq
        %v1540 = vshrl.u32 %v1539, 7
        %v1541 = vsub.s32 %v1538, %v1540
        %v1542 = vrot.slane %v1528, %v1541
        %v1543 = vcombine.low %v1478, %v1494
        %v1544 = vcombine.high %v1478, %v1494
        %v1546 = vunpack.c.l.s4 1934713408
        %v1547 = vunpack.c.0.s8 %v1546
        %v1548 = vlaneseq
        %v1549 = vshrl.u32 %v1548, 7
        %v1550 = vsub.s32 %v1547, %v1549
        %v1551 = vrot.slane %v1543, %v1550
        %v1553 = vunpack.c.l.s4 1934713408
        %v1554 = vunpack.c.0.s8 %v1553
        %v1555 = vlaneseq
        %v1556 = vshrl.u32 %v1555, 7
        %v1557 = vsub.s32 %v1554, %v1556
        %v1558 = vrot.slane %v1544, %v1557
        %v1559 = vcombine.low %v1503, %v1535
        %v1560 = vcombine.high %v1503, %v1535
        %v1561 = vcombine.low %v1510, %v1542
        %v1562 = vcombine.high %v1510, %v1542
        %v1563 = vcombine.low %v1519, %v1551
        %v1564 = vcombine.high %v1519, %v1551
        %v1565 = vcombine.low %v1526, %v1558
        %v1566 = vcombine.high %v1526, %v1558
        %v1567 = vcombine.low %v1319, %v1327
        %v1568 = vcombine.high %v1319, %v1327
        %v1570 = vunpack.c.l.s4 1983009808
        %v1571 = vunpack.c.0.s8 %v1570
        %v1572 = vlaneseq
        %v1573 = vshrl.u32 %v1572, 7
        %v1574 = vsub.s32 %v1571, %v1573
        %v1575 = vrot.slane %v1567, %v1574
        %v1577 = vunpack.c.l.s4 1983009808
        %v1578 = vunpack.c.0.s8 %v1577
        %v1579 = vlaneseq
        %v1580 = vshrl.u32 %v1579, 7
        %v1581 = vsub.s32 %v1578, %v1580
        %v1582 = vrot.slane %v1568, %v1581
        %v1583 = vcombine.low %v1323, %v1331
        %v1584 = vcombine.high %v1323, %v1331
        %v1586 = vunpack.c.l.s4 1983009808
        %v1587 = vunpack.c.0.s8 %v1586
        %v1588 = vlaneseq
        %v1589 = vshrl.u32 %v1588, 7
        %v1590 = vsub.s32 %v1587, %v1589
        %v1591 = vrot.slane %v1583, %v1590
        %v1593 = vunpack.c.l.s4 1983009808
        %v1594 = vunpack.c.0.s8 %v1593
        %v1595 = vlaneseq
        %v1596 = vshrl.u32 %v1595, 7
        %v1597 = vsub.s32 %v1594, %v1596
        %v1598 = vrot.slane %v1584, %v1597
        %v1599 = vcombine.low %v1335, %v1343
        %v1600 = vcombine.high %v1335, %v1343
        %v1602 = vunpack.c.l.s4 1983009808
        %v1603 = vunpack.c.0.s8 %v1602
        %v1604 = vlaneseq
        %v1605 = vshrl.u32 %v1604, 7
        %v1606 = vsub.s32 %v1603, %v1605
        %v1607 = vrot.slane %v1599, %v1606
        %v1609 = vunpack.c.l.s4 1983009808
        %v1610 = vunpack.c.0.s8 %v1609
        %v1611 = vlaneseq
        %v1612 = vshrl.u32 %v1611, 7
        %v1613 = vsub.s32 %v1610, %v1612
        %v1614 = vrot.slane %v1600, %v1613
        %v1615 = vcombine.low %v1339, %v1347
        %v1616 = vcombine.high %v1339, %v1347
        %v1618 = vunpack.c.l.s4 1983009808
        %v1619 = vunpack.c.0.s8 %v1618
        %v1620 = vlaneseq
        %v1621 = vshrl.u32 %v1620, 7
        %v1622 = vsub.s32 %v1619, %v1621
        %v1623 = vrot.slane %v1615, %v1622
        %v1625 = vunpack.c.l.s4 1983009808
        %v1626 = vunpack.c.0.s8 %v1625
        %v1627 = vlaneseq
        %v1628 = vshrl.u32 %v1627, 7
        %v1629 = vsub.s32 %v1626, %v1628
        %v1630 = vrot.slane %v1616, %v1629
        %v1631 = vcombine.low %v1575, %v1591
        %v1632 = vcombine.high %v1575, %v1591
        %v1634 = vunpack.c.l.s4 1934713408
        %v1635 = vunpack.c.0.s8 %v1634
        %v1636 = vlaneseq
        %v1637 = vshrl.u32 %v1636, 7
        %v1638 = vsub.s32 %v1635, %v1637
        %v1639 = vrot.slane %v1631, %v1638
        %v1641 = vunpack.c.l.s4 1934713408
        %v1642 = vunpack.c.0.s8 %v1641
        %v1643 = vlaneseq
        %v1644 = vshrl.u32 %v1643, 7
        %v1645 = vsub.s32 %v1642, %v1644
        %v1646 = vrot.slane %v1632, %v1645
        %v1647 = vcombine.low %v1582, %v1598
        %v1648 = vcombine.high %v1582, %v1598
        %v1650 = vunpack.c.l.s4 1934713408
        %v1651 = vunpack.c.0.s8 %v1650
        %v1652 = vlaneseq
        %v1653 = vshrl.u32 %v1652, 7
        %v1654 = vsub.s32 %v1651, %v1653
        %v1655 = vrot.slane %v1647, %v1654
        %v1657 = vunpack.c.l.s4 1934713408
        %v1658 = vunpack.c.0.s8 %v1657
        %v1659 = vlaneseq
        %v1660 = vshrl.u32 %v1659, 7
        %v1661 = vsub.s32 %v1658, %v1660
        %v1662 = vrot.slane %v1648, %v1661
        %v1663 = vcombine.low %v1607, %v1623
        %v1664 = vcombine.high %v1607, %v1623
        %v1666 = vunpack.c.l.s4 1934713408
        %v1667 = vunpack.c.0.s8 %v1666
        %v1668 = vlaneseq
        %v1669 = vshrl.u32 %v1668, 7
        %v1670 = vsub.s32 %v1667, %v1669
        %v1671 = vrot.slane %v1663, %v1670
        %v1673 = vunpack.c.l.s4 1934713408
        %v1674 = vunpack.c.0.s8 %v1673
        %v1675 = vlaneseq
        %v1676 = vshrl.u32 %v1675, 7
        %v1677 = vsub.s32 %v1674, %v1676
        %v1678 = vrot.slane %v1664, %v1677
        %v1679 = vcombine.low %v1614, %v1630
        %v1680 = vcombine.high %v1614, %v1630
        %v1682 = vunpack.c.l.s4 1934713408
        %v1683 = vunpack.c.0.s8 %v1682
        %v1684 = vlaneseq
        %v1685 = vshrl.u32 %v1684, 7
        %v1686 = vsub.s32 %v1683, %v1685
        %v1687 = vrot.slane %v1679, %v1686
        %v1689 = vunpack.c.l.s4 1934713408
        %v1690 = vunpack.c.0.s8 %v1689
        %v1691 = vlaneseq
        %v1692 = vshrl.u32 %v1691, 7
        %v1693 = vsub.s32 %v1690, %v1692
        %v1694 = vrot.slane %v1680, %v1693
        %v1695 = vcombine.low %v1639, %v1671
        %v1696 = vcombine.high %v1639, %v1671
        %v1697 = vcombine.low %v1646, %v1678
        %v1698 = vcombine.high %v1646, %v1678
        %v1699 = vcombine.low %v1655, %v1687
        %v1700 = vcombine.high %v1655, %v1687
        %v1701 = vcombine.low %v1662, %v1694
        %v1702 = vcombine.high %v1662, %v1694
        %v1703 = vcombine.low %v1320, %v1328
        %v1704 = vcombine.high %v1320, %v1328
        %v1706 = vunpack.c.l.s4 1983009808
        %v1707 = vunpack.c.0.s8 %v1706
        %v1708 = vlaneseq
        %v1709 = vshrl.u32 %v1708, 7
        %v1710 = vsub.s32 %v1707, %v1709
        %v1711 = vrot.slane %v1703, %v1710
        %v1713 = vunpack.c.l.s4 1983009808
        %v1714 = vunpack.c.0.s8 %v1713
        %v1715 = vlaneseq
        %v1716 = vshrl.u32 %v1715, 7
        %v1717 = vsub.s32 %v1714, %v1716
        %v1718 = vrot.slane %v1704, %v1717
        %v1719 = vcombine.low %v1324, %v1332
        %v1720 = vcombine.high %v1324, %v1332
        %v1722 = vunpack.c.l.s4 1983009808
        %v1723 = vunpack.c.0.s8 %v1722
        %v1724 = vlaneseq
        %v1725 = vshrl.u32 %v1724, 7
        %v1726 = vsub.s32 %v1723, %v1725
        %v1727 = vrot.slane %v1719, %v1726
        %v1729 = vunpack.c.l.s4 1983009808
        %v1730 = vunpack.c.0.s8 %v1729
        %v1731 = vlaneseq
        %v1732 = vshrl.u32 %v1731, 7
        %v1733 = vsub.s32 %v1730, %v1732
        %v1734 = vrot.slane %v1720, %v1733
        %v1735 = vcombine.low %v1336, %v1344
        %v1736 = vcombine.high %v1336, %v1344
        %v1738 = vunpack.c.l.s4 1983009808
        %v1739 = vunpack.c.0.s8 %v1738
        %v1740 = vlaneseq
        %v1741 = vshrl.u32 %v1740, 7
        %v1742 = vsub.s32 %v1739, %v1741
        %v1743 = vrot.slane %v1735, %v1742
        %v1745 = vunpack.c.l.s4 1983009808
        %v1746 = vunpack.c.0.s8 %v1745
        %v1747 = vlaneseq
        %v1748 = vshrl.u32 %v1747, 7
        %v1749 = vsub.s32 %v1746, %v1748
        %v1750 = vrot.slane %v1736, %v1749
        %v1751 = vcombine.low %v1340, %v1348
        %v1752 = vcombine.high %v1340, %v1348
        %v1754 = vunpack.c.l.s4 1983009808
        %v1755 = vunpack.c.0.s8 %v1754
        %v1756 = vlaneseq
        %v1757 = vshrl.u32 %v1756, 7
        %v1758 = vsub.s32 %v1755, %v1757
        %v1759 = vrot.slane %v1751, %v1758
        %v1761 = vunpack.c.l.s4 1983009808
        %v1762 = vunpack.c.0.s8 %v1761
        %v1763 = vlaneseq
        %v1764 = vshrl.u32 %v1763, 7
        %v1765 = vsub.s32 %v1762, %v1764
        %v1766 = vrot.slane %v1752, %v1765
        %v1767 = vcombine.low %v1711, %v1727
        %v1768 = vcombine.high %v1711, %v1727
        %v1770 = vunpack.c.l.s4 1934713408
        %v1771 = vunpack.c.0.s8 %v1770
        %v1772 = vlaneseq
        %v1773 = vshrl.u32 %v1772, 7
        %v1774 = vsub.s32 %v1771, %v1773
        %v1775 = vrot.slane %v1767, %v1774
        %v1777 = vunpack.c.l.s4 1934713408
        %v1778 = vunpack.c.0.s8 %v1777
        %v1779 = vlaneseq
        %v1780 = vshrl.u32 %v1779, 7
        %v1781 = vsub.s32 %v1778, %v1780
        %v1782 = vrot.slane %v1768, %v1781
        %v1783 = vcombine.low %v1718, %v1734
        %v1784 = vcombine.high %v1718, %v1734
        %v1786 = vunpack.c.l.s4 1934713408
        %v1787 = vunpack.c.0.s8 %v1786
        %v1788 = vlaneseq
        %v1789 = vshrl.u32 %v1788, 7
        %v1790 = vsub.s32 %v1787, %v1789
        %v1791 = vrot.slane %v1783, %v1790
        %v1793 = vunpack.c.l.s4 1934713408
        %v1794 = vunpack.c.0.s8 %v1793
        %v1795 = vlaneseq
        %v1796 = vshrl.u32 %v1795, 7
        %v1797 = vsub.s32 %v1794, %v1796
        %v1798 = vrot.slane %v1784, %v1797
        %v1799 = vcombine.low %v1743, %v1759
        %v1800 = vcombine.high %v1743, %v1759
        %v1802 = vunpack.c.l.s4 1934713408
        %v1803 = vunpack.c.0.s8 %v1802
        %v1804 = vlaneseq
        %v1805 = vshrl.u32 %v1804, 7
        %v1806 = vsub.s32 %v1803, %v1805
        %v1807 = vrot.slane %v1799, %v1806
        %v1809 = vunpack.c.l.s4 1934713408
        %v1810 = vunpack.c.0.s8 %v1809
        %v1811 = vlaneseq
        %v1812 = vshrl.u32 %v1811, 7
        %v1813 = vsub.s32 %v1810, %v1812
        %v1814 = vrot.slane %v1800, %v1813
        %v1815 = vcombine.low %v1750, %v1766
        %v1816 = vcombine.high %v1750, %v1766
        %v1818 = vunpack.c.l.s4 1934713408
        %v1819 = vunpack.c.0.s8 %v1818
        %v1820 = vlaneseq
        %v1821 = vshrl.u32 %v1820, 7
        %v1822 = vsub.s32 %v1819, %v1821
        %v1823 = vrot.slane %v1815, %v1822
        %v1825 = vunpack.c.l.s4 1934713408
        %v1826 = vunpack.c.0.s8 %v1825
        %v1827 = vlaneseq
        %v1828 = vshrl.u32 %v1827, 7
        %v1829 = vsub.s32 %v1826, %v1828
        %v1830 = vrot.slane %v1816, %v1829
        %v1831 = vcombine.low %v1775, %v1807
        %v1832 = vcombine.high %v1775, %v1807
        %v1833 = vcombine.low %v1782, %v1814
        %v1834 = vcombine.high %v1782, %v1814
        %v1835 = vcombine.low %v1791, %v1823
        %v1836 = vcombine.high %v1791, %v1823
        %v1837 = vcombine.low %v1798, %v1830
        %v1838 = vcombine.high %v1798, %v1830
        %v1839 = vcombine.low %v1321, %v1329
        %v1840 = vcombine.high %v1321, %v1329
        %v1842 = vunpack.c.l.s4 1983009808
        %v1843 = vunpack.c.0.s8 %v1842
        %v1844 = vlaneseq
        %v1845 = vshrl.u32 %v1844, 7
        %v1846 = vsub.s32 %v1843, %v1845
        %v1847 = vrot.slane %v1839, %v1846
        %v1849 = vunpack.c.l.s4 1983009808
        %v1850 = vunpack.c.0.s8 %v1849
        %v1851 = vlaneseq
        %v1852 = vshrl.u32 %v1851, 7
        %v1853 = vsub.s32 %v1850, %v1852
        %v1854 = vrot.slane %v1840, %v1853
        %v1855 = vcombine.low %v1325, %v1333
        %v1856 = vcombine.high %v1325, %v1333
        %v1858 = vunpack.c.l.s4 1983009808
        %v1859 = vunpack.c.0.s8 %v1858
        %v1860 = vlaneseq
        %v1861 = vshrl.u32 %v1860, 7
        %v1862 = vsub.s32 %v1859, %v1861
        %v1863 = vrot.slane %v1855, %v1862
        %v1865 = vunpack.c.l.s4 1983009808
        %v1866 = vunpack.c.0.s8 %v1865
        %v1867 = vlaneseq
        %v1868 = vshrl.u32 %v1867, 7
        %v1869 = vsub.s32 %v1866, %v1868
        %v1870 = vrot.slane %v1856, %v1869
        %v1871 = vcombine.low %v1337, %v1345
        %v1872 = vcombine.high %v1337, %v1345
        %v1874 = vunpack.c.l.s4 1983009808
        %v1875 = vunpack.c.0.s8 %v1874
        %v1876 = vlaneseq
        %v1877 = vshrl.u32 %v1876, 7
        %v1878 = vsub.s32 %v1875, %v1877
        %v1879 = vrot.slane %v1871, %v1878
        %v1881 = vunpack.c.l.s4 1983009808
        %v1882 = vunpack.c.0.s8 %v1881
        %v1883 = vlaneseq
        %v1884 = vshrl.u32 %v1883, 7
        %v1885 = vsub.s32 %v1882, %v1884
        %v1886 = vrot.slane %v1872, %v1885
        %v1887 = vcombine.low %v1341, %v1349
        %v1888 = vcombine.high %v1341, %v1349
        %v1890 = vunpack.c.l.s4 1983009808
        %v1891 = vunpack.c.0.s8 %v1890
        %v1892 = vlaneseq
        %v1893 = vshrl.u32 %v1892, 7
        %v1894 = vsub.s32 %v1891, %v1893
        %v1895 = vrot.slane %v1887, %v1894
        %v1897 = vunpack.c.l.s4 1983009808
        %v1898 = vunpack.c.0.s8 %v1897
        %v1899 = vlaneseq
        %v1900 = vshrl.u32 %v1899, 7
        %v1901 = vsub.s32 %v1898, %v1900
        %v1902 = vrot.slane %v1888, %v1901
        %v1903 = vcombine.low %v1847, %v1863
        %v1904 = vcombine.high %v1847, %v1863
        %v1906 = vunpack.c.l.s4 1934713408
        %v1907 = vunpack.c.0.s8 %v1906
        %v1908 = vlaneseq
        %v1909 = vshrl.u32 %v1908, 7
        %v1910 = vsub.s32 %v1907, %v1909
        %v1911 = vrot.slane %v1903, %v1910
        %v1913 = vunpack.c.l.s4 1934713408
        %v1914 = vunpack.c.0.s8 %v1913
        %v1915 = vlaneseq
        %v1916 = vshrl.u32 %v1915, 7
        %v1917 = vsub.s32 %v1914, %v1916
        %v1918 = vrot.slane %v1904, %v1917
        %v1919 = vcombine.low %v1854, %v1870
        %v1920 = vcombine.high %v1854, %v1870
        %v1922 = vunpack.c.l.s4 1934713408
        %v1923 = vunpack.c.0.s8 %v1922
        %v1924 = vlaneseq
        %v1925 = vshrl.u32 %v1924, 7
        %v1926 = vsub.s32 %v1923, %v1925
        %v1927 = vrot.slane %v1919, %v1926
        %v1929 = vunpack.c.l.s4 1934713408
        %v1930 = vunpack.c.0.s8 %v1929
        %v1931 = vlaneseq
        %v1932 = vshrl.u32 %v1931, 7
        %v1933 = vsub.s32 %v1930, %v1932
        %v1934 = vrot.slane %v1920, %v1933
        %v1935 = vcombine.low %v1879, %v1895
        %v1936 = vcombine.high %v1879, %v1895
        %v1938 = vunpack.c.l.s4 1934713408
        %v1939 = vunpack.c.0.s8 %v1938
        %v1940 = vlaneseq
        %v1941 = vshrl.u32 %v1940, 7
        %v1942 = vsub.s32 %v1939, %v1941
        %v1943 = vrot.slane %v1935, %v1942
        %v1945 = vunpack.c.l.s4 1934713408
        %v1946 = vunpack.c.0.s8 %v1945
        %v1947 = vlaneseq
        %v1948 = vshrl.u32 %v1947, 7
        %v1949 = vsub.s32 %v1946, %v1948
        %v1950 = vrot.slane %v1936, %v1949
        %v1951 = vcombine.low %v1886, %v1902
        %v1952 = vcombine.high %v1886, %v1902
        %v1954 = vunpack.c.l.s4 1934713408
        %v1955 = vunpack.c.0.s8 %v1954
        %v1956 = vlaneseq
        %v1957 = vshrl.u32 %v1956, 7
        %v1958 = vsub.s32 %v1955, %v1957
        %v1959 = vrot.slane %v1951, %v1958
        %v1961 = vunpack.c.l.s4 1934713408
        %v1962 = vunpack.c.0.s8 %v1961
        %v1963 = vlaneseq
        %v1964 = vshrl.u32 %v1963, 7
        %v1965 = vsub.s32 %v1962, %v1964
        %v1966 = vrot.slane %v1952, %v1965
        %v1967 = vcombine.low %v1911, %v1943
        %v1968 = vcombine.high %v1911, %v1943
        %v1969 = vcombine.low %v1918, %v1950
        %v1970 = vcombine.high %v1918, %v1950
        %v1971 = vcombine.low %v1927, %v1959
        %v1972 = vcombine.high %v1927, %v1959
        %v1973 = vcombine.low %v1934, %v1966
        %v1974 = vcombine.high %v1934, %v1966
        %1976 = vrot.lane.b32.xlu0 %v1560, 32
        %v1977 = vpop.permute.xlu0 %1976
        %1980 = vrot.lane.b32.xlu0 %v1561, 64
        %v1981 = vpop.permute.xlu0 %1980
        %1984 = vrot.lane.b32.xlu0 %v1562, 96
        %v1985 = vpop.permute.xlu0 %1984
        %1988 = vrot.lane.b32.xlu0 %v1564, 32
        %v1989 = vpop.permute.xlu0 %1988
        %1992 = vrot.lane.b32.xlu0 %v1565, 64
        %v1993 = vpop.permute.xlu0 %1992
        %1996 = vrot.lane.b32.xlu0 %v1566, 96
        %v1997 = vpop.permute.xlu0 %1996
        %2000 = vrot.lane.b32.xlu0 %v1696, 32
        %v2001 = vpop.permute.xlu0 %2000
        %2004 = vrot.lane.b32.xlu0 %v1697, 64
        %v2005 = vpop.permute.xlu0 %2004
        %2008 = vrot.lane.b32.xlu0 %v1698, 96
        %v2009 = vpop.permute.xlu0 %2008
        %2012 = vrot.lane.b32.xlu0 %v1700, 32
        %v2013 = vpop.permute.xlu0 %2012
        %2016 = vrot.lane.b32.xlu0 %v1701, 64
        %v2017 = vpop.permute.xlu0 %2016
        %2020 = vrot.lane.b32.xlu0 %v1702, 96
        %v2021 = vpop.permute.xlu0 %2020
        %2024 = vrot.lane.b32.xlu0 %v1832, 32
        %v2025 = vpop.permute.xlu0 %2024
        %2028 = vrot.lane.b32.xlu0 %v1833, 64
        %v2029 = vpop.permute.xlu0 %2028
        %2032 = vrot.lane.b32.xlu0 %v1834, 96
        %v2033 = vpop.permute.xlu0 %2032
        %2036 = vrot.lane.b32.xlu0 %v1836, 32
        %v2037 = vpop.permute.xlu0 %2036
        %2040 = vrot.lane.b32.xlu0 %v1837, 64
        %v2041 = vpop.permute.xlu0 %2040
        %2044 = vrot.lane.b32.xlu0 %v1838, 96
        %v2045 = vpop.permute.xlu0 %2044
        %2048 = vrot.lane.b32.xlu0 %v1968, 32
        %v2049 = vpop.permute.xlu0 %2048
        %2052 = vrot.lane.b32.xlu0 %v1969, 64
        %v2053 = vpop.permute.xlu0 %2052
        %2056 = vrot.lane.b32.xlu0 %v1970, 96
        %v2057 = vpop.permute.xlu0 %2056
        %2060 = vrot.lane.b32.xlu0 %v1972, 32
        %v2061 = vpop.permute.xlu0 %2060
        %2064 = vrot.lane.b32.xlu0 %v1973, 64
        %v2065 = vpop.permute.xlu0 %2064
        %2068 = vrot.lane.b32.xlu0 %v1974, 96
        %v2069 = vpop.permute.xlu0 %2068
        %vm2071 = vcmask 261120
        %v2072 = vsel %vm2071, %v1559, %v1977
        %vm2073 = vcmask 523264
        %v2074 = vsel %vm2073, %v2072, %v1981
        %vm2075 = vcmask 785408
        %v2076 = vsel %vm2075, %v2074, %v1985
        %v2077 = vsel %vm2071, %v1563, %v1989
        %v2078 = vsel %vm2073, %v2077, %v1993
        %v2079 = vsel %vm2075, %v2078, %v1997
        %v2080 = vsel %vm2071, %v1695, %v2001
        %v2081 = vsel %vm2073, %v2080, %v2005
        %v2082 = vsel %vm2075, %v2081, %v2009
        %v2083 = vsel %vm2071, %v1699, %v2013
        %v2084 = vsel %vm2073, %v2083, %v2017
        %v2085 = vsel %vm2075, %v2084, %v2021
        %v2086 = vsel %vm2071, %v1831, %v2025
        %v2087 = vsel %vm2073, %v2086, %v2029
        %v2088 = vsel %vm2075, %v2087, %v2033
        %v2089 = vsel %vm2071, %v1835, %v2037
        %v2090 = vsel %vm2073, %v2089, %v2041
        %v2091 = vsel %vm2075, %v2090, %v2045
        %v2092 = vsel %vm2071, %v1967, %v2049
        %v2093 = vsel %vm2073, %v2092, %v2053
        %v2094 = vsel %vm2075, %v2093, %v2057
        %v2095 = vsel %vm2071, %v1971, %v2061
        %v2096 = vsel %vm2073, %v2095, %v2065
        %v2097 = vsel %vm2075, %v2096, %v2069
        %v2098 = vcombine.low %v1401, %v1409
        %v2099 = vcombine.high %v1401, %v1409
        %v2101 = vunpack.c.l.s4 1983009808
        %v2102 = vunpack.c.0.s8 %v2101
        %v2103 = vlaneseq
        %v2104 = vshrl.u32 %v2103, 7
        %v2105 = vsub.s32 %v2102, %v2104
        %v2106 = vrot.slane %v2098, %v2105
        %v2108 = vunpack.c.l.s4 1983009808
        %v2109 = vunpack.c.0.s8 %v2108
        %v2110 = vlaneseq
        %v2111 = vshrl.u32 %v2110, 7
        %v2112 = vsub.s32 %v2109, %v2111
        %v2113 = vrot.slane %v2099, %v2112
        %v2114 = vcombine.low %v1405, %v1413
        %v2115 = vcombine.high %v1405, %v1413
        %v2117 = vunpack.c.l.s4 1983009808
        %v2118 = vunpack.c.0.s8 %v2117
        %v2119 = vlaneseq
        %v2120 = vshrl.u32 %v2119, 7
        %v2121 = vsub.s32 %v2118, %v2120
        %v2122 = vrot.slane %v2114, %v2121
        %v2124 = vunpack.c.l.s4 1983009808
        %v2125 = vunpack.c.0.s8 %v2124
        %v2126 = vlaneseq
        %v2127 = vshrl.u32 %v2126, 7
        %v2128 = vsub.s32 %v2125, %v2127
        %v2129 = vrot.slane %v2115, %v2128
        %v2130 = vcombine.low %v1417, %v1425
        %v2131 = vcombine.high %v1417, %v1425
        %v2133 = vunpack.c.l.s4 1983009808
        %v2134 = vunpack.c.0.s8 %v2133
        %v2135 = vlaneseq
        %v2136 = vshrl.u32 %v2135, 7
        %v2137 = vsub.s32 %v2134, %v2136
        %v2138 = vrot.slane %v2130, %v2137
        %v2140 = vunpack.c.l.s4 1983009808
        %v2141 = vunpack.c.0.s8 %v2140
        %v2142 = vlaneseq
        %v2143 = vshrl.u32 %v2142, 7
        %v2144 = vsub.s32 %v2141, %v2143
        %v2145 = vrot.slane %v2131, %v2144
        %v2146 = vcombine.low %v1421, %v1429
        %v2147 = vcombine.high %v1421, %v1429
        %v2149 = vunpack.c.l.s4 1983009808
        %v2150 = vunpack.c.0.s8 %v2149
        %v2151 = vlaneseq
        %v2152 = vshrl.u32 %v2151, 7
        %v2153 = vsub.s32 %v2150, %v2152
        %v2154 = vrot.slane %v2146, %v2153
        %v2156 = vunpack.c.l.s4 1983009808
        %v2157 = vunpack.c.0.s8 %v2156
        %v2158 = vlaneseq
        %v2159 = vshrl.u32 %v2158, 7
        %v2160 = vsub.s32 %v2157, %v2159
        %v2161 = vrot.slane %v2147, %v2160
        %v2162 = vcombine.low %v2106, %v2122
        %v2163 = vcombine.high %v2106, %v2122
        %v2165 = vunpack.c.l.s4 1934713408
        %v2166 = vunpack.c.0.s8 %v2165
        %v2167 = vlaneseq
        %v2168 = vshrl.u32 %v2167, 7
        %v2169 = vsub.s32 %v2166, %v2168
        %v2170 = vrot.slane %v2162, %v2169
        %v2172 = vunpack.c.l.s4 1934713408
        %v2173 = vunpack.c.0.s8 %v2172
        %v2174 = vlaneseq
        %v2175 = vshrl.u32 %v2174, 7
        %v2176 = vsub.s32 %v2173, %v2175
        %v2177 = vrot.slane %v2163, %v2176
        %v2178 = vcombine.low %v2113, %v2129
        %v2179 = vcombine.high %v2113, %v2129
        %v2181 = vunpack.c.l.s4 1934713408
        %v2182 = vunpack.c.0.s8 %v2181
        %v2183 = vlaneseq
        %v2184 = vshrl.u32 %v2183, 7
        %v2185 = vsub.s32 %v2182, %v2184
        %v2186 = vrot.slane %v2178, %v2185
        %v2188 = vunpack.c.l.s4 1934713408
        %v2189 = vunpack.c.0.s8 %v2188
        %v2190 = vlaneseq
        %v2191 = vshrl.u32 %v2190, 7
        %v2192 = vsub.s32 %v2189, %v2191
        %v2193 = vrot.slane %v2179, %v2192
        %v2194 = vcombine.low %v2138, %v2154
        %v2195 = vcombine.high %v2138, %v2154
        %v2197 = vunpack.c.l.s4 1934713408
        %v2198 = vunpack.c.0.s8 %v2197
        %v2199 = vlaneseq
        %v2200 = vshrl.u32 %v2199, 7
        %v2201 = vsub.s32 %v2198, %v2200
        %v2202 = vrot.slane %v2194, %v2201
        %v2204 = vunpack.c.l.s4 1934713408
        %v2205 = vunpack.c.0.s8 %v2204
        %v2206 = vlaneseq
        %v2207 = vshrl.u32 %v2206, 7
        %v2208 = vsub.s32 %v2205, %v2207
        %v2209 = vrot.slane %v2195, %v2208
        %v2210 = vcombine.low %v2145, %v2161
        %v2211 = vcombine.high %v2145, %v2161
        %v2213 = vunpack.c.l.s4 1934713408
        %v2214 = vunpack.c.0.s8 %v2213
        %v2215 = vlaneseq
        %v2216 = vshrl.u32 %v2215, 7
        %v2217 = vsub.s32 %v2214, %v2216
        %v2218 = vrot.slane %v2210, %v2217
        %v2220 = vunpack.c.l.s4 1934713408
        %v2221 = vunpack.c.0.s8 %v2220
        %v2222 = vlaneseq
        %v2223 = vshrl.u32 %v2222, 7
        %v2224 = vsub.s32 %v2221, %v2223
        %v2225 = vrot.slane %v2211, %v2224
        %v2226 = vcombine.low %v2170, %v2202
        %v2227 = vcombine.high %v2170, %v2202
        %v2228 = vcombine.low %v2177, %v2209
        %v2229 = vcombine.high %v2177, %v2209
        %v2230 = vcombine.low %v2186, %v2218
        %v2231 = vcombine.high %v2186, %v2218
        %v2232 = vcombine.low %v2193, %v2225
        %v2233 = vcombine.high %v2193, %v2225
        %2235 = vrot.lane.b32.xlu0 %v2227, 32
        %v2236 = vpop.permute.xlu0 %2235
        %2239 = vrot.lane.b32.xlu0 %v2228, 64
        %v2240 = vpop.permute.xlu0 %2239
        %2243 = vrot.lane.b32.xlu0 %v2229, 96
        %v2244 = vpop.permute.xlu0 %2243
        %2247 = vrot.lane.b32.xlu0 %v2231, 32
        %v2248 = vpop.permute.xlu0 %2247
        %2251 = vrot.lane.b32.xlu0 %v2232, 64
        %v2252 = vpop.permute.xlu0 %2251
        %2255 = vrot.lane.b32.xlu0 %v2233, 96
        %v2256 = vpop.permute.xlu0 %2255
        %v2258 = vsel %vm2071, %v2226, %v2236
        %v2259 = vsel %vm2073, %v2258, %v2240
        %v2260 = vsel %vm2075, %v2259, %v2244
        %v2261 = vsel %vm2071, %v2230, %v2248
        %v2262 = vsel %vm2073, %v2261, %v2252
        %v2263 = vsel %vm2075, %v2262, %v2256
        %vm2264 = vcmask 64512
        %v2266 = vsel %vm2264, %v1350, 0
        %2268 = vmatprep.subr.mxu0 0.0
        %2269 = vmatpush1.msra.mxu0 0.0
        %2270 = vmatprep.subr.mxu0 0.0
        %2271 = vmatpush1.msra.mxu0 0.0
        %2272 = vmatprep.subr.mxu0 0.0
        %2273 = vmatpush1.msra.mxu0 0.0
        %2274 = vmatprep.subr.mxu0 0.0
        %2275 = vmatpush1.msra.mxu0 0.0
        %2276 = vmatprep.subr.mxu0 0.0
        %2277 = vmatpush1.msra.mxu0 0.0
        %2278 = vmatprep.subr.mxu0 0.0
        %2279 = vmatpush1.msra.mxu0 0.0
        %2280 = vmatprep.subr.mxu0 0.0
        %2281 = vmatpush1.msra.mxu0 0.0
        %2282 = vmatprep.subr.mxu0 0.0
        %2283 = vmatpush1.msra.mxu0 0.0
        %2284 = vmatprep.subr.mxu0 0.0
        %2285 = vmatpush1.msra.mxu0 0.0
        %2286 = vmatprep.subr.mxu0 0.0
        %2287 = vmatpush1.msra.mxu0 0.0
        %2288 = vmatprep.subr.mxu0 0.0
        %2289 = vmatpush1.msra.mxu0 0.0
        %2290 = vmatprep.subr.mxu0 0.0
        %2291 = vmatpush1.msra.mxu0 0.0
        %2292 = vmatprep.subr.mxu0 0.0
        %2293 = vmatpush1.msra.mxu0 0.0
        %2294 = vmatprep.subr.mxu0 0.0
        %2295 = vmatpush1.msra.mxu0 0.0
        %2296 = vmatprep.subr.mxu0 0.0
        %2297 = vmatpush1.msra.mxu0 0.0
        %2298 = vmatprep.subr.mxu0 %v2079
        %2299 = vmatpush1.msra.mxu0 %v2076
        %2300 = vmatprep.subr.mxu0 0.0
        %2301 = vmatpush2.msra.mxu0 0.0
        %2302 = vmatprep.subr.mxu0 0.0
        %2303 = vmatpush2.msra.mxu0 0.0
        %2304 = vmatprep.subr.mxu0 0.0
        %2305 = vmatpush2.msra.mxu0 0.0
        %2306 = vmatprep.subr.mxu0 0.0
        %2307 = vmatpush2.msra.mxu0 0.0
        %2308 = vmatprep.subr.mxu0 0.0
        %2309 = vmatpush2.msra.mxu0 0.0
        %2310 = vmatprep.subr.mxu0 0.0
        %2311 = vmatpush2.msra.mxu0 0.0
        %2312 = vmatprep.subr.mxu0 0.0
        %2313 = vmatpush2.msra.mxu0 0.0
        %2314 = vmatprep.subr.mxu0 0.0
        %2315 = vmatpush2.msra.mxu0 0.0
        %2316 = vmatprep.subr.mxu0 0.0
        %2317 = vmatpush2.msra.mxu0 0.0
        %2318 = vmatprep.subr.mxu0 0.0
        %2319 = vmatpush2.msra.mxu0 0.0
        %2320 = vmatprep.subr.mxu0 0.0
        %2321 = vmatpush2.msra.mxu0 0.0
        %2322 = vmatprep.subr.mxu0 0.0
        %2323 = vmatpush2.msra.mxu0 0.0
        %2324 = vmatprep.subr.mxu0 0.0
        %2325 = vmatpush2.msra.mxu0 0.0
        %2326 = vmatprep.subr.mxu0 0.0
        %2327 = vmatpush2.msra.mxu0 0.0
        %2328 = vmatprep.subr.mxu0 0.0
        %2329 = vmatpush2.msra.mxu0 0.0
        %2330 = vmatprep.subr.mxu0 0.0
        %2331 = vmatpush2.msra.mxu0 0.0
        %2332 = vmatprep.mubr.f32.mxu0 0.0
        %2333 = vmatmul.mubr.f32.gmra.mxu0 %v2266
        %v2334 = vpop.f32.mrf.mxu0
        %v2335 = vadd.f32 %v2260, %v2334
        %v2336 = vpop.f32.mrf.mxu0
        %v2337 = vadd.f32 %v2263, %v2336
        %2338 = vdwg.mxu0
        %2339 = vmatprep.subr.mxu0 0.0
        %2340 = vmatpush1.msra.mxu0 0.0
        %2341 = vmatprep.subr.mxu0 0.0
        %2342 = vmatpush1.msra.mxu0 0.0
        %2343 = vmatprep.subr.mxu0 0.0
        %2344 = vmatpush1.msra.mxu0 0.0
        %2345 = vmatprep.subr.mxu0 0.0
        %2346 = vmatpush1.msra.mxu0 0.0
        %2347 = vmatprep.subr.mxu0 0.0
        %2348 = vmatpush1.msra.mxu0 0.0
        %2349 = vmatprep.subr.mxu0 0.0
        %2350 = vmatpush1.msra.mxu0 0.0
        %2351 = vmatprep.subr.mxu0 0.0
        %2352 = vmatpush1.msra.mxu0 0.0
        %2353 = vmatprep.subr.mxu0 0.0
        %2354 = vmatpush1.msra.mxu0 0.0
        %2355 = vmatprep.subr.mxu0 0.0
        %2356 = vmatpush1.msra.mxu0 0.0
        %2357 = vmatprep.subr.mxu0 0.0
        %2358 = vmatpush1.msra.mxu0 0.0
        %2359 = vmatprep.subr.mxu0 0.0
        %2360 = vmatpush1.msra.mxu0 0.0
        %2361 = vmatprep.subr.mxu0 0.0
        %2362 = vmatpush1.msra.mxu0 0.0
        %2363 = vmatprep.subr.mxu0 0.0
        %2364 = vmatpush1.msra.mxu0 0.0
        %2365 = vmatprep.subr.mxu0 0.0
        %2366 = vmatpush1.msra.mxu0 0.0
        %2367 = vmatprep.subr.mxu0 0.0
        %2368 = vmatpush1.msra.mxu0 0.0
        %2369 = vmatprep.subr.mxu0 %v2085
        %2370 = vmatpush1.msra.mxu0 %v2082
        %2371 = vmatprep.subr.mxu0 0.0
        %2372 = vmatpush2.msra.mxu0 0.0
        %2373 = vmatprep.subr.mxu0 0.0
        %2374 = vmatpush2.msra.mxu0 0.0
        %2375 = vmatprep.subr.mxu0 0.0
        %2376 = vmatpush2.msra.mxu0 0.0
        %2377 = vmatprep.subr.mxu0 0.0
        %2378 = vmatpush2.msra.mxu0 0.0
        %2379 = vmatprep.subr.mxu0 0.0
        %2380 = vmatpush2.msra.mxu0 0.0
        %2381 = vmatprep.subr.mxu0 0.0
        %2382 = vmatpush2.msra.mxu0 0.0
        %2383 = vmatprep.subr.mxu0 0.0
        %2384 = vmatpush2.msra.mxu0 0.0
        %2385 = vmatprep.subr.mxu0 0.0
        %2386 = vmatpush2.msra.mxu0 0.0
        %2387 = vmatprep.subr.mxu0 0.0
        %2388 = vmatpush2.msra.mxu0 0.0
        %2389 = vmatprep.subr.mxu0 0.0
        %2390 = vmatpush2.msra.mxu0 0.0
        %2391 = vmatprep.subr.mxu0 0.0
        %2392 = vmatpush2.msra.mxu0 0.0
        %2393 = vmatprep.subr.mxu0 0.0
        %2394 = vmatpush2.msra.mxu0 0.0
        %2395 = vmatprep.subr.mxu0 0.0
        %2396 = vmatpush2.msra.mxu0 0.0
        %2397 = vmatprep.subr.mxu0 0.0
        %2398 = vmatpush2.msra.mxu0 0.0
        %2399 = vmatprep.subr.mxu0 0.0
        %2400 = vmatpush2.msra.mxu0 0.0
        %2401 = vmatprep.subr.mxu0 0.0
        %2402 = vmatpush2.msra.mxu0 0.0
        %2403 = vmatprep.mubr.f32.mxu0 0.0
        %2404 = vmatmul.mubr.f32.gmra.mxu0 %v2266
        %v2405 = vpop.f32.mrf.mxu0
        %v2406 = vadd.f32 %v2260, %v2405
        %v2407 = vpop.f32.mrf.mxu0
        %v2408 = vadd.f32 %v2263, %v2407
        %2409 = vdwg.mxu0
        %2410 = vmatprep.subr.mxu0 0.0
        %2411 = vmatpush1.msra.mxu0 0.0
        %2412 = vmatprep.subr.mxu0 0.0
        %2413 = vmatpush1.msra.mxu0 0.0
        %2414 = vmatprep.subr.mxu0 0.0
        %2415 = vmatpush1.msra.mxu0 0.0
        %2416 = vmatprep.subr.mxu0 0.0
        %2417 = vmatpush1.msra.mxu0 0.0
        %2418 = vmatprep.subr.mxu0 0.0
        %2419 = vmatpush1.msra.mxu0 0.0
        %2420 = vmatprep.subr.mxu0 0.0
        %2421 = vmatpush1.msra.mxu0 0.0
        %2422 = vmatprep.subr.mxu0 0.0
        %2423 = vmatpush1.msra.mxu0 0.0
        %2424 = vmatprep.subr.mxu0 0.0
        %2425 = vmatpush1.msra.mxu0 0.0
        %2426 = vmatprep.subr.mxu0 0.0
        %2427 = vmatpush1.msra.mxu0 0.0
        %2428 = vmatprep.subr.mxu0 0.0
        %2429 = vmatpush1.msra.mxu0 0.0
        %2430 = vmatprep.subr.mxu0 0.0
        %2431 = vmatpush1.msra.mxu0 0.0
        %2432 = vmatprep.subr.mxu0 0.0
        %2433 = vmatpush1.msra.mxu0 0.0
        %2434 = vmatprep.subr.mxu0 0.0
        %2435 = vmatpush1.msra.mxu0 0.0
        %2436 = vmatprep.subr.mxu0 0.0
        %2437 = vmatpush1.msra.mxu0 0.0
        %2438 = vmatprep.subr.mxu0 0.0
        %2439 = vmatpush1.msra.mxu0 0.0
        %2440 = vmatprep.subr.mxu0 %v2091
        %2441 = vmatpush1.msra.mxu0 %v2088
        %2442 = vmatprep.subr.mxu0 0.0
        %2443 = vmatpush2.msra.mxu0 0.0
        %2444 = vmatprep.subr.mxu0 0.0
        %2445 = vmatpush2.msra.mxu0 0.0
        %2446 = vmatprep.subr.mxu0 0.0
        %2447 = vmatpush2.msra.mxu0 0.0
        %2448 = vmatprep.subr.mxu0 0.0
        %2449 = vmatpush2.msra.mxu0 0.0
        %2450 = vmatprep.subr.mxu0 0.0
        %2451 = vmatpush2.msra.mxu0 0.0
        %2452 = vmatprep.subr.mxu0 0.0
        %2453 = vmatpush2.msra.mxu0 0.0
        %2454 = vmatprep.subr.mxu0 0.0
        %2455 = vmatpush2.msra.mxu0 0.0
        %2456 = vmatprep.subr.mxu0 0.0
        %2457 = vmatpush2.msra.mxu0 0.0
        %2458 = vmatprep.subr.mxu0 0.0
        %2459 = vmatpush2.msra.mxu0 0.0
        %2460 = vmatprep.subr.mxu0 0.0
        %2461 = vmatpush2.msra.mxu0 0.0
        %2462 = vmatprep.subr.mxu0 0.0
        %2463 = vmatpush2.msra.mxu0 0.0
        %2464 = vmatprep.subr.mxu0 0.0
        %2465 = vmatpush2.msra.mxu0 0.0
        %2466 = vmatprep.subr.mxu0 0.0
        %2467 = vmatpush2.msra.mxu0 0.0
        %2468 = vmatprep.subr.mxu0 0.0
        %2469 = vmatpush2.msra.mxu0 0.0
        %2470 = vmatprep.subr.mxu0 0.0
        %2471 = vmatpush2.msra.mxu0 0.0
        %2472 = vmatprep.subr.mxu0 0.0
        %2473 = vmatpush2.msra.mxu0 0.0
        %2474 = vmatprep.mubr.f32.mxu0 0.0
        %2475 = vmatmul.mubr.f32.gmra.mxu0 %v2266
        %v2476 = vpop.f32.mrf.mxu0
        %v2477 = vadd.f32 %v2260, %v2476
        %v2478 = vpop.f32.mrf.mxu0
        %v2479 = vadd.f32 %v2263, %v2478
        %2480 = vdwg.mxu0
        %2481 = vmatprep.subr.mxu0 0.0
        %2482 = vmatpush1.msra.mxu0 0.0
        %2483 = vmatprep.subr.mxu0 0.0
        %2484 = vmatpush1.msra.mxu0 0.0
        %2485 = vmatprep.subr.mxu0 0.0
        %2486 = vmatpush1.msra.mxu0 0.0
        %2487 = vmatprep.subr.mxu0 0.0
        %2488 = vmatpush1.msra.mxu0 0.0
        %2489 = vmatprep.subr.mxu0 0.0
        %2490 = vmatpush1.msra.mxu0 0.0
        %2491 = vmatprep.subr.mxu0 0.0
        %2492 = vmatpush1.msra.mxu0 0.0
        %2493 = vmatprep.subr.mxu0 0.0
        %2494 = vmatpush1.msra.mxu0 0.0
        %2495 = vmatprep.subr.mxu0 0.0
        %2496 = vmatpush1.msra.mxu0 0.0
        %2497 = vmatprep.subr.mxu0 0.0
        %2498 = vmatpush1.msra.mxu0 0.0
        %2499 = vmatprep.subr.mxu0 0.0
        %2500 = vmatpush1.msra.mxu0 0.0
        %2501 = vmatprep.subr.mxu0 0.0
        %2502 = vmatpush1.msra.mxu0 0.0
        %2503 = vmatprep.subr.mxu0 0.0
        %2504 = vmatpush1.msra.mxu0 0.0
        %2505 = vmatprep.subr.mxu0 0.0
        %2506 = vmatpush1.msra.mxu0 0.0
        %2507 = vmatprep.subr.mxu0 0.0
        %2508 = vmatpush1.msra.mxu0 0.0
        %2509 = vmatprep.subr.mxu0 0.0
        %2510 = vmatpush1.msra.mxu0 0.0
        %2511 = vmatprep.subr.mxu0 %v2097
        %2512 = vmatpush1.msra.mxu0 %v2094
        %2513 = vmatprep.subr.mxu0 0.0
        %2514 = vmatpush2.msra.mxu0 0.0
        %2515 = vmatprep.subr.mxu0 0.0
        %2516 = vmatpush2.msra.mxu0 0.0
        %2517 = vmatprep.subr.mxu0 0.0
        %2518 = vmatpush2.msra.mxu0 0.0
        %2519 = vmatprep.subr.mxu0 0.0
        %2520 = vmatpush2.msra.mxu0 0.0
        %2521 = vmatprep.subr.mxu0 0.0
        %2522 = vmatpush2.msra.mxu0 0.0
        %2523 = vmatprep.subr.mxu0 0.0
        %2524 = vmatpush2.msra.mxu0 0.0
        %2525 = vmatprep.subr.mxu0 0.0
        %2526 = vmatpush2.msra.mxu0 0.0
        %2527 = vmatprep.subr.mxu0 0.0
        %2528 = vmatpush2.msra.mxu0 0.0
        %2529 = vmatprep.subr.mxu0 0.0
        %2530 = vmatpush2.msra.mxu0 0.0
        %2531 = vmatprep.subr.mxu0 0.0
        %2532 = vmatpush2.msra.mxu0 0.0
        %2533 = vmatprep.subr.mxu0 0.0
        %2534 = vmatpush2.msra.mxu0 0.0
        %2535 = vmatprep.subr.mxu0 0.0
        %2536 = vmatpush2.msra.mxu0 0.0
        %2537 = vmatprep.subr.mxu0 0.0
        %2538 = vmatpush2.msra.mxu0 0.0
        %2539 = vmatprep.subr.mxu0 0.0
        %2540 = vmatpush2.msra.mxu0 0.0
        %2541 = vmatprep.subr.mxu0 0.0
        %2542 = vmatpush2.msra.mxu0 0.0
        %2543 = vmatprep.subr.mxu0 0.0
        %2544 = vmatpush2.msra.mxu0 0.0
        %2545 = vmatprep.mubr.f32.mxu0 0.0
        %2546 = vmatmul.mubr.f32.gmra.mxu0 %v2266
        %v2547 = vpop.f32.mrf.mxu0
        %v2548 = vadd.f32 %v2260, %v2547
        %v2549 = vpop.f32.mrf.mxu0
        %v2550 = vadd.f32 %v2263, %v2549
        %2551 = vdwg.mxu0
        %2553 = vrot.lane.b32.xlu0 %v2335, 96
        %v2554 = vpop.permute.xlu0 %2553
        %2556 = vrot.lane.b32.xlu0 %v2335, 64
        %v2557 = vpop.permute.xlu0 %2556
        %2559 = vrot.lane.b32.xlu0 %v2335, 32
        %v2560 = vpop.permute.xlu0 %2559
        %2563 = vrot.lane.b32.xlu0 %v2337, 96
        %v2564 = vpop.permute.xlu0 %2563
        %2566 = vrot.lane.b32.xlu0 %v2337, 64
        %v2567 = vpop.permute.xlu0 %2566
        %2569 = vrot.lane.b32.xlu0 %v2337, 32
        %v2570 = vpop.permute.xlu0 %2569
        %2573 = vrot.lane.b32.xlu0 %v2406, 96
        %v2574 = vpop.permute.xlu0 %2573
        %2576 = vrot.lane.b32.xlu0 %v2406, 64
        %v2577 = vpop.permute.xlu0 %2576
        %2579 = vrot.lane.b32.xlu0 %v2406, 32
        %v2580 = vpop.permute.xlu0 %2579
        %2583 = vrot.lane.b32.xlu0 %v2408, 96
        %v2584 = vpop.permute.xlu0 %2583
        %2586 = vrot.lane.b32.xlu0 %v2408, 64
        %v2587 = vpop.permute.xlu0 %2586
        %2589 = vrot.lane.b32.xlu0 %v2408, 32
        %v2590 = vpop.permute.xlu0 %2589
        %2593 = vrot.lane.b32.xlu0 %v2477, 96
        %v2594 = vpop.permute.xlu0 %2593
        %2596 = vrot.lane.b32.xlu0 %v2477, 64
        %v2597 = vpop.permute.xlu0 %2596
        %2599 = vrot.lane.b32.xlu0 %v2477, 32
        %v2600 = vpop.permute.xlu0 %2599
        %2603 = vrot.lane.b32.xlu0 %v2479, 96
        %v2604 = vpop.permute.xlu0 %2603
        %2606 = vrot.lane.b32.xlu0 %v2479, 64
        %v2607 = vpop.permute.xlu0 %2606
        %2609 = vrot.lane.b32.xlu0 %v2479, 32
        %v2610 = vpop.permute.xlu0 %2609
        %2613 = vrot.lane.b32.xlu0 %v2548, 96
        %v2614 = vpop.permute.xlu0 %2613
        %2616 = vrot.lane.b32.xlu0 %v2548, 64
        %v2617 = vpop.permute.xlu0 %2616
        %2619 = vrot.lane.b32.xlu0 %v2548, 32
        %v2620 = vpop.permute.xlu0 %2619
        %2623 = vrot.lane.b32.xlu0 %v2550, 96
        %v2624 = vpop.permute.xlu0 %2623
        %2626 = vrot.lane.b32.xlu0 %v2550, 64
        %v2627 = vpop.permute.xlu0 %2626
        %2629 = vrot.lane.b32.xlu0 %v2550, 32
        %v2630 = vpop.permute.xlu0 %2629
        %v2632 = vcombine.low %v2335, %v2557
        %v2633 = vcombine.high %v2335, %v2557
        %v2635 = vunpack.c.l.s4 1983009808
        %v2636 = vunpack.c.0.s8 %v2635
        %v2637 = vlaneseq
        %v2638 = vshrl.u32 %v2637, 7
        %v2639 = vsub.s32 %v2636, %v2638
        %v2640 = vrot.slane %v2632, %v2639
        %v2642 = vunpack.c.l.s4 1983009808
        %v2643 = vunpack.c.0.s8 %v2642
        %v2644 = vlaneseq
        %v2645 = vshrl.u32 %v2644, 7
        %v2646 = vsub.s32 %v2643, %v2645
        %v2647 = vrot.slane %v2633, %v2646
        %v2648 = vcombine.low %v2554, %v2560
        %v2649 = vcombine.high %v2554, %v2560
        %v2651 = vunpack.c.l.s4 1983009808
        %v2652 = vunpack.c.0.s8 %v2651
        %v2653 = vlaneseq
        %v2654 = vshrl.u32 %v2653, 7
        %v2655 = vsub.s32 %v2652, %v2654
        %v2656 = vrot.slane %v2648, %v2655
        %v2658 = vunpack.c.l.s4 1983009808
        %v2659 = vunpack.c.0.s8 %v2658
        %v2660 = vlaneseq
        %v2661 = vshrl.u32 %v2660, 7
        %v2662 = vsub.s32 %v2659, %v2661
        %v2663 = vrot.slane %v2649, %v2662
        %v2664 = vcombine.low %v2337, %v2567
        %v2665 = vcombine.high %v2337, %v2567
        %v2667 = vunpack.c.l.s4 1983009808
        %v2668 = vunpack.c.0.s8 %v2667
        %v2669 = vlaneseq
        %v2670 = vshrl.u32 %v2669, 7
        %v2671 = vsub.s32 %v2668, %v2670
        %v2672 = vrot.slane %v2664, %v2671
        %v2674 = vunpack.c.l.s4 1983009808
        %v2675 = vunpack.c.0.s8 %v2674
        %v2676 = vlaneseq
        %v2677 = vshrl.u32 %v2676, 7
        %v2678 = vsub.s32 %v2675, %v2677
        %v2679 = vrot.slane %v2665, %v2678
        %v2680 = vcombine.low %v2564, %v2570
        %v2681 = vcombine.high %v2564, %v2570
        %v2683 = vunpack.c.l.s4 1983009808
        %v2684 = vunpack.c.0.s8 %v2683
        %v2685 = vlaneseq
        %v2686 = vshrl.u32 %v2685, 7
        %v2687 = vsub.s32 %v2684, %v2686
        %v2688 = vrot.slane %v2680, %v2687
        %v2690 = vunpack.c.l.s4 1983009808
        %v2691 = vunpack.c.0.s8 %v2690
        %v2692 = vlaneseq
        %v2693 = vshrl.u32 %v2692, 7
        %v2694 = vsub.s32 %v2691, %v2693
        %v2695 = vrot.slane %v2681, %v2694
        %v2696 = vcombine.low %v2640, %v2656
        %v2697 = vcombine.high %v2640, %v2656
        %v2699 = vunpack.c.l.s4 1934713408
        %v2700 = vunpack.c.0.s8 %v2699
        %v2701 = vlaneseq
        %v2702 = vshrl.u32 %v2701, 7
        %v2703 = vsub.s32 %v2700, %v2702
        %v2704 = vrot.slane %v2696, %v2703
        %v2706 = vunpack.c.l.s4 1934713408
        %v2707 = vunpack.c.0.s8 %v2706
        %v2708 = vlaneseq
        %v2709 = vshrl.u32 %v2708, 7
        %v2710 = vsub.s32 %v2707, %v2709
        %v2711 = vrot.slane %v2697, %v2710
        %v2712 = vcombine.low %v2647, %v2663
        %v2713 = vcombine.high %v2647, %v2663
        %v2715 = vunpack.c.l.s4 1934713408
        %v2716 = vunpack.c.0.s8 %v2715
        %v2717 = vlaneseq
        %v2718 = vshrl.u32 %v2717, 7
        %v2719 = vsub.s32 %v2716, %v2718
        %v2720 = vrot.slane %v2712, %v2719
        %v2722 = vunpack.c.l.s4 1934713408
        %v2723 = vunpack.c.0.s8 %v2722
        %v2724 = vlaneseq
        %v2725 = vshrl.u32 %v2724, 7
        %v2726 = vsub.s32 %v2723, %v2725
        %v2727 = vrot.slane %v2713, %v2726
        %v2728 = vcombine.low %v2672, %v2688
        %v2729 = vcombine.high %v2672, %v2688
        %v2731 = vunpack.c.l.s4 1934713408
        %v2732 = vunpack.c.0.s8 %v2731
        %v2733 = vlaneseq
        %v2734 = vshrl.u32 %v2733, 7
        %v2735 = vsub.s32 %v2732, %v2734
        %v2736 = vrot.slane %v2728, %v2735
        %v2738 = vunpack.c.l.s4 1934713408
        %v2739 = vunpack.c.0.s8 %v2738
        %v2740 = vlaneseq
        %v2741 = vshrl.u32 %v2740, 7
        %v2742 = vsub.s32 %v2739, %v2741
        %v2743 = vrot.slane %v2729, %v2742
        %v2744 = vcombine.low %v2679, %v2695
        %v2745 = vcombine.high %v2679, %v2695
        %v2747 = vunpack.c.l.s4 1934713408
        %v2748 = vunpack.c.0.s8 %v2747
        %v2749 = vlaneseq
        %v2750 = vshrl.u32 %v2749, 7
        %v2751 = vsub.s32 %v2748, %v2750
        %v2752 = vrot.slane %v2744, %v2751
        %v2754 = vunpack.c.l.s4 1934713408
        %v2755 = vunpack.c.0.s8 %v2754
        %v2756 = vlaneseq
        %v2757 = vshrl.u32 %v2756, 7
        %v2758 = vsub.s32 %v2755, %v2757
        %v2759 = vrot.slane %v2745, %v2758
        %v2760 = vcombine.low %v2704, %v2736
        %v2761 = vcombine.high %v2704, %v2736
        %v2762 = vcombine.low %v2711, %v2743
        %v2763 = vcombine.high %v2711, %v2743
        %v2764 = vcombine.low %v2720, %v2752
        %v2765 = vcombine.high %v2720, %v2752
        %v2766 = vcombine.low %v2727, %v2759
        %v2767 = vcombine.high %v2727, %v2759
        %v2768 = vcombine.low %v2406, %v2577
        %v2769 = vcombine.high %v2406, %v2577
        %v2771 = vunpack.c.l.s4 1983009808
        %v2772 = vunpack.c.0.s8 %v2771
        %v2773 = vlaneseq
        %v2774 = vshrl.u32 %v2773, 7
        %v2775 = vsub.s32 %v2772, %v2774
        %v2776 = vrot.slane %v2768, %v2775
        %v2778 = vunpack.c.l.s4 1983009808
        %v2779 = vunpack.c.0.s8 %v2778
        %v2780 = vlaneseq
        %v2781 = vshrl.u32 %v2780, 7
        %v2782 = vsub.s32 %v2779, %v2781
        %v2783 = vrot.slane %v2769, %v2782
        %v2784 = vcombine.low %v2574, %v2580
        %v2785 = vcombine.high %v2574, %v2580
        %v2787 = vunpack.c.l.s4 1983009808
        %v2788 = vunpack.c.0.s8 %v2787
        %v2789 = vlaneseq
        %v2790 = vshrl.u32 %v2789, 7
        %v2791 = vsub.s32 %v2788, %v2790
        %v2792 = vrot.slane %v2784, %v2791
        %v2794 = vunpack.c.l.s4 1983009808
        %v2795 = vunpack.c.0.s8 %v2794
        %v2796 = vlaneseq
        %v2797 = vshrl.u32 %v2796, 7
        %v2798 = vsub.s32 %v2795, %v2797
        %v2799 = vrot.slane %v2785, %v2798
        %v2800 = vcombine.low %v2408, %v2587
        %v2801 = vcombine.high %v2408, %v2587
        %v2803 = vunpack.c.l.s4 1983009808
        %v2804 = vunpack.c.0.s8 %v2803
        %v2805 = vlaneseq
        %v2806 = vshrl.u32 %v2805, 7
        %v2807 = vsub.s32 %v2804, %v2806
        %v2808 = vrot.slane %v2800, %v2807
        %v2810 = vunpack.c.l.s4 1983009808
        %v2811 = vunpack.c.0.s8 %v2810
        %v2812 = vlaneseq
        %v2813 = vshrl.u32 %v2812, 7
        %v2814 = vsub.s32 %v2811, %v2813
        %v2815 = vrot.slane %v2801, %v2814
        %v2816 = vcombine.low %v2584, %v2590
        %v2817 = vcombine.high %v2584, %v2590
        %v2819 = vunpack.c.l.s4 1983009808
        %v2820 = vunpack.c.0.s8 %v2819
        %v2821 = vlaneseq
        %v2822 = vshrl.u32 %v2821, 7
        %v2823 = vsub.s32 %v2820, %v2822
        %v2824 = vrot.slane %v2816, %v2823
        %v2826 = vunpack.c.l.s4 1983009808
        %v2827 = vunpack.c.0.s8 %v2826
        %v2828 = vlaneseq
        %v2829 = vshrl.u32 %v2828, 7
        %v2830 = vsub.s32 %v2827, %v2829
        %v2831 = vrot.slane %v2817, %v2830
        %v2832 = vcombine.low %v2776, %v2792
        %v2833 = vcombine.high %v2776, %v2792
        %v2835 = vunpack.c.l.s4 1934713408
        %v2836 = vunpack.c.0.s8 %v2835
        %v2837 = vlaneseq
        %v2838 = vshrl.u32 %v2837, 7
        %v2839 = vsub.s32 %v2836, %v2838
        %v2840 = vrot.slane %v2832, %v2839
        %v2842 = vunpack.c.l.s4 1934713408
        %v2843 = vunpack.c.0.s8 %v2842
        %v2844 = vlaneseq
        %v2845 = vshrl.u32 %v2844, 7
        %v2846 = vsub.s32 %v2843, %v2845
        %v2847 = vrot.slane %v2833, %v2846
        %v2848 = vcombine.low %v2783, %v2799
        %v2849 = vcombine.high %v2783, %v2799
        %v2851 = vunpack.c.l.s4 1934713408
        %v2852 = vunpack.c.0.s8 %v2851
        %v2853 = vlaneseq
        %v2854 = vshrl.u32 %v2853, 7
        %v2855 = vsub.s32 %v2852, %v2854
        %v2856 = vrot.slane %v2848, %v2855
        %v2858 = vunpack.c.l.s4 1934713408
        %v2859 = vunpack.c.0.s8 %v2858
        %v2860 = vlaneseq
        %v2861 = vshrl.u32 %v2860, 7
        %v2862 = vsub.s32 %v2859, %v2861
        %v2863 = vrot.slane %v2849, %v2862
        %v2864 = vcombine.low %v2808, %v2824
        %v2865 = vcombine.high %v2808, %v2824
        %v2867 = vunpack.c.l.s4 1934713408
        %v2868 = vunpack.c.0.s8 %v2867
        %v2869 = vlaneseq
        %v2870 = vshrl.u32 %v2869, 7
        %v2871 = vsub.s32 %v2868, %v2870
        %v2872 = vrot.slane %v2864, %v2871
        %v2874 = vunpack.c.l.s4 1934713408
        %v2875 = vunpack.c.0.s8 %v2874
        %v2876 = vlaneseq
        %v2877 = vshrl.u32 %v2876, 7
        %v2878 = vsub.s32 %v2875, %v2877
        %v2879 = vrot.slane %v2865, %v2878
        %v2880 = vcombine.low %v2815, %v2831
        %v2881 = vcombine.high %v2815, %v2831
        %v2883 = vunpack.c.l.s4 1934713408
        %v2884 = vunpack.c.0.s8 %v2883
        %v2885 = vlaneseq
        %v2886 = vshrl.u32 %v2885, 7
        %v2887 = vsub.s32 %v2884, %v2886
        %v2888 = vrot.slane %v2880, %v2887
        %v2890 = vunpack.c.l.s4 1934713408
        %v2891 = vunpack.c.0.s8 %v2890
        %v2892 = vlaneseq
        %v2893 = vshrl.u32 %v2892, 7
        %v2894 = vsub.s32 %v2891, %v2893
        %v2895 = vrot.slane %v2881, %v2894
        %v2896 = vcombine.low %v2840, %v2872
        %v2897 = vcombine.high %v2840, %v2872
        %v2898 = vcombine.low %v2847, %v2879
        %v2899 = vcombine.high %v2847, %v2879
        %v2900 = vcombine.low %v2856, %v2888
        %v2901 = vcombine.high %v2856, %v2888
        %v2902 = vcombine.low %v2863, %v2895
        %v2903 = vcombine.high %v2863, %v2895
        %v2904 = vcombine.low %v2477, %v2597
        %v2905 = vcombine.high %v2477, %v2597
        %v2907 = vunpack.c.l.s4 1983009808
        %v2908 = vunpack.c.0.s8 %v2907
        %v2909 = vlaneseq
        %v2910 = vshrl.u32 %v2909, 7
        %v2911 = vsub.s32 %v2908, %v2910
        %v2912 = vrot.slane %v2904, %v2911
        %v2914 = vunpack.c.l.s4 1983009808
        %v2915 = vunpack.c.0.s8 %v2914
        %v2916 = vlaneseq
        %v2917 = vshrl.u32 %v2916, 7
        %v2918 = vsub.s32 %v2915, %v2917
        %v2919 = vrot.slane %v2905, %v2918
        %v2920 = vcombine.low %v2594, %v2600
        %v2921 = vcombine.high %v2594, %v2600
        %v2923 = vunpack.c.l.s4 1983009808
        %v2924 = vunpack.c.0.s8 %v2923
        %v2925 = vlaneseq
        %v2926 = vshrl.u32 %v2925, 7
        %v2927 = vsub.s32 %v2924, %v2926
        %v2928 = vrot.slane %v2920, %v2927
        %v2930 = vunpack.c.l.s4 1983009808
        %v2931 = vunpack.c.0.s8 %v2930
        %v2932 = vlaneseq
        %v2933 = vshrl.u32 %v2932, 7
        %v2934 = vsub.s32 %v2931, %v2933
        %v2935 = vrot.slane %v2921, %v2934
        %v2936 = vcombine.low %v2479, %v2607
        %v2937 = vcombine.high %v2479, %v2607
        %v2939 = vunpack.c.l.s4 1983009808
        %v2940 = vunpack.c.0.s8 %v2939
        %v2941 = vlaneseq
        %v2942 = vshrl.u32 %v2941, 7
        %v2943 = vsub.s32 %v2940, %v2942
        %v2944 = vrot.slane %v2936, %v2943
        %v2946 = vunpack.c.l.s4 1983009808
        %v2947 = vunpack.c.0.s8 %v2946
        %v2948 = vlaneseq
        %v2949 = vshrl.u32 %v2948, 7
        %v2950 = vsub.s32 %v2947, %v2949
        %v2951 = vrot.slane %v2937, %v2950
        %v2952 = vcombine.low %v2604, %v2610
        %v2953 = vcombine.high %v2604, %v2610
        %v2955 = vunpack.c.l.s4 1983009808
        %v2956 = vunpack.c.0.s8 %v2955
        %v2957 = vlaneseq
        %v2958 = vshrl.u32 %v2957, 7
        %v2959 = vsub.s32 %v2956, %v2958
        %v2960 = vrot.slane %v2952, %v2959
        %v2962 = vunpack.c.l.s4 1983009808
        %v2963 = vunpack.c.0.s8 %v2962
        %v2964 = vlaneseq
        %v2965 = vshrl.u32 %v2964, 7
        %v2966 = vsub.s32 %v2963, %v2965
        %v2967 = vrot.slane %v2953, %v2966
        %v2968 = vcombine.low %v2912, %v2928
        %v2969 = vcombine.high %v2912, %v2928
        %v2971 = vunpack.c.l.s4 1934713408
        %v2972 = vunpack.c.0.s8 %v2971
        %v2973 = vlaneseq
        %v2974 = vshrl.u32 %v2973, 7
        %v2975 = vsub.s32 %v2972, %v2974
        %v2976 = vrot.slane %v2968, %v2975
        %v2978 = vunpack.c.l.s4 1934713408
        %v2979 = vunpack.c.0.s8 %v2978
        %v2980 = vlaneseq
        %v2981 = vshrl.u32 %v2980, 7
        %v2982 = vsub.s32 %v2979, %v2981
        %v2983 = vrot.slane %v2969, %v2982
        %v2984 = vcombine.low %v2919, %v2935
        %v2985 = vcombine.high %v2919, %v2935
        %v2987 = vunpack.c.l.s4 1934713408
        %v2988 = vunpack.c.0.s8 %v2987
        %v2989 = vlaneseq
        %v2990 = vshrl.u32 %v2989, 7
        %v2991 = vsub.s32 %v2988, %v2990
        %v2992 = vrot.slane %v2984, %v2991
        %v2994 = vunpack.c.l.s4 1934713408
        %v2995 = vunpack.c.0.s8 %v2994
        %v2996 = vlaneseq
        %v2997 = vshrl.u32 %v2996, 7
        %v2998 = vsub.s32 %v2995, %v2997
        %v2999 = vrot.slane %v2985, %v2998
        %v3000 = vcombine.low %v2944, %v2960
        %v3001 = vcombine.high %v2944, %v2960
        %v3003 = vunpack.c.l.s4 1934713408
        %v3004 = vunpack.c.0.s8 %v3003
        %v3005 = vlaneseq
        %v3006 = vshrl.u32 %v3005, 7
        %v3007 = vsub.s32 %v3004, %v3006
        %v3008 = vrot.slane %v3000, %v3007
        %v3010 = vunpack.c.l.s4 1934713408
        %v3011 = vunpack.c.0.s8 %v3010
        %v3012 = vlaneseq
        %v3013 = vshrl.u32 %v3012, 7
        %v3014 = vsub.s32 %v3011, %v3013
        %v3015 = vrot.slane %v3001, %v3014
        %v3016 = vcombine.low %v2951, %v2967
        %v3017 = vcombine.high %v2951, %v2967
        %v3019 = vunpack.c.l.s4 1934713408
        %v3020 = vunpack.c.0.s8 %v3019
        %v3021 = vlaneseq
        %v3022 = vshrl.u32 %v3021, 7
        %v3023 = vsub.s32 %v3020, %v3022
        %v3024 = vrot.slane %v3016, %v3023
        %v3026 = vunpack.c.l.s4 1934713408
        %v3027 = vunpack.c.0.s8 %v3026
        %v3028 = vlaneseq
        %v3029 = vshrl.u32 %v3028, 7
        %v3030 = vsub.s32 %v3027, %v3029
        %v3031 = vrot.slane %v3017, %v3030
        %v3032 = vcombine.low %v2976, %v3008
        %v3033 = vcombine.high %v2976, %v3008
        %v3034 = vcombine.low %v2983, %v3015
        %v3035 = vcombine.high %v2983, %v3015
        %v3036 = vcombine.low %v2992, %v3024
        %v3037 = vcombine.high %v2992, %v3024
        %v3038 = vcombine.low %v2999, %v3031
        %v3039 = vcombine.high %v2999, %v3031
        %v3040 = vcombine.low %v2548, %v2617
        %v3041 = vcombine.high %v2548, %v2617
        %v3043 = vunpack.c.l.s4 1983009808
        %v3044 = vunpack.c.0.s8 %v3043
        %v3045 = vlaneseq
        %v3046 = vshrl.u32 %v3045, 7
        %v3047 = vsub.s32 %v3044, %v3046
        %v3048 = vrot.slane %v3040, %v3047
        %v3050 = vunpack.c.l.s4 1983009808
        %v3051 = vunpack.c.0.s8 %v3050
        %v3052 = vlaneseq
        %v3053 = vshrl.u32 %v3052, 7
        %v3054 = vsub.s32 %v3051, %v3053
        %v3055 = vrot.slane %v3041, %v3054
        %v3056 = vcombine.low %v2614, %v2620
        %v3057 = vcombine.high %v2614, %v2620
        %v3059 = vunpack.c.l.s4 1983009808
        %v3060 = vunpack.c.0.s8 %v3059
        %v3061 = vlaneseq
        %v3062 = vshrl.u32 %v3061, 7
        %v3063 = vsub.s32 %v3060, %v3062
        %v3064 = vrot.slane %v3056, %v3063
        %v3066 = vunpack.c.l.s4 1983009808
        %v3067 = vunpack.c.0.s8 %v3066
        %v3068 = vlaneseq
        %v3069 = vshrl.u32 %v3068, 7
        %v3070 = vsub.s32 %v3067, %v3069
        %v3071 = vrot.slane %v3057, %v3070
        %v3072 = vcombine.low %v2550, %v2627
        %v3073 = vcombine.high %v2550, %v2627
        %v3075 = vunpack.c.l.s4 1983009808
        %v3076 = vunpack.c.0.s8 %v3075
        %v3077 = vlaneseq
        %v3078 = vshrl.u32 %v3077, 7
        %v3079 = vsub.s32 %v3076, %v3078
        %v3080 = vrot.slane %v3072, %v3079
        %v3082 = vunpack.c.l.s4 1983009808
        %v3083 = vunpack.c.0.s8 %v3082
        %v3084 = vlaneseq
        %v3085 = vshrl.u32 %v3084, 7
        %v3086 = vsub.s32 %v3083, %v3085
        %v3087 = vrot.slane %v3073, %v3086
        %v3088 = vcombine.low %v2624, %v2630
        %v3089 = vcombine.high %v2624, %v2630
        %v3091 = vunpack.c.l.s4 1983009808
        %v3092 = vunpack.c.0.s8 %v3091
        %v3093 = vlaneseq
        %v3094 = vshrl.u32 %v3093, 7
        %v3095 = vsub.s32 %v3092, %v3094
        %v3096 = vrot.slane %v3088, %v3095
        %v3098 = vunpack.c.l.s4 1983009808
        %v3099 = vunpack.c.0.s8 %v3098
        %v3100 = vlaneseq
        %v3101 = vshrl.u32 %v3100, 7
        %v3102 = vsub.s32 %v3099, %v3101
        %v3103 = vrot.slane %v3089, %v3102
        %v3104 = vcombine.low %v3048, %v3064
        %v3105 = vcombine.high %v3048, %v3064
        %v3107 = vunpack.c.l.s4 1934713408
        %v3108 = vunpack.c.0.s8 %v3107
        %v3109 = vlaneseq
        %v3110 = vshrl.u32 %v3109, 7
        %v3111 = vsub.s32 %v3108, %v3110
        %v3112 = vrot.slane %v3104, %v3111
        %v3114 = vunpack.c.l.s4 1934713408
        %v3115 = vunpack.c.0.s8 %v3114
        %v3116 = vlaneseq
        %v3117 = vshrl.u32 %v3116, 7
        %v3118 = vsub.s32 %v3115, %v3117
        %v3119 = vrot.slane %v3105, %v3118
        %v3120 = vcombine.low %v3055, %v3071
        %v3121 = vcombine.high %v3055, %v3071
        %v3123 = vunpack.c.l.s4 1934713408
        %v3124 = vunpack.c.0.s8 %v3123
        %v3125 = vlaneseq
        %v3126 = vshrl.u32 %v3125, 7
        %v3127 = vsub.s32 %v3124, %v3126
        %v3128 = vrot.slane %v3120, %v3127
        %v3130 = vunpack.c.l.s4 1934713408
        %v3131 = vunpack.c.0.s8 %v3130
        %v3132 = vlaneseq
        %v3133 = vshrl.u32 %v3132, 7
        %v3134 = vsub.s32 %v3131, %v3133
        %v3135 = vrot.slane %v3121, %v3134
        %v3136 = vcombine.low %v3080, %v3096
        %v3137 = vcombine.high %v3080, %v3096
        %v3139 = vunpack.c.l.s4 1934713408
        %v3140 = vunpack.c.0.s8 %v3139
        %v3141 = vlaneseq
        %v3142 = vshrl.u32 %v3141, 7
        %v3143 = vsub.s32 %v3140, %v3142
        %v3144 = vrot.slane %v3136, %v3143
        %v3146 = vunpack.c.l.s4 1934713408
        %v3147 = vunpack.c.0.s8 %v3146
        %v3148 = vlaneseq
        %v3149 = vshrl.u32 %v3148, 7
        %v3150 = vsub.s32 %v3147, %v3149
        %v3151 = vrot.slane %v3137, %v3150
        %v3152 = vcombine.low %v3087, %v3103
        %v3153 = vcombine.high %v3087, %v3103
        %v3155 = vunpack.c.l.s4 1934713408
        %v3156 = vunpack.c.0.s8 %v3155
        %v3157 = vlaneseq
        %v3158 = vshrl.u32 %v3157, 7
        %v3159 = vsub.s32 %v3156, %v3158
        %v3160 = vrot.slane %v3152, %v3159
        %v3162 = vunpack.c.l.s4 1934713408
        %v3163 = vunpack.c.0.s8 %v3162
        %v3164 = vlaneseq
        %v3165 = vshrl.u32 %v3164, 7
        %v3166 = vsub.s32 %v3163, %v3165
        %v3167 = vrot.slane %v3153, %v3166
        %v3168 = vcombine.low %v3112, %v3144
        %v3169 = vcombine.high %v3112, %v3144
        %v3170 = vcombine.low %v3119, %v3151
        %v3171 = vcombine.high %v3119, %v3151
        %v3172 = vcombine.low %v3128, %v3160
        %v3173 = vcombine.high %v3128, %v3160
        %v3174 = vcombine.low %v3135, %v3167
        %v3175 = vcombine.high %v3135, %v3167
        %v3176 = vadd.f32 %v2760, %v1160
        %v3177 = vadd.f32 %v2896, %v1165
        %v3178 = vadd.f32 %v3032, %v1170
        %v3179 = vadd.f32 %v3168, %v1175
        %v3180 = vadd.f32 %v2761, %v1180
        %v3181 = vadd.f32 %v2897, %v1185
        %v3182 = vadd.f32 %v3033, %v1190
        %v3183 = vadd.f32 %v3169, %v1195
        %v3184 = vadd.f32 %v2762, %v1200
        %v3185 = vadd.f32 %v2898, %v1205
        %v3186 = vadd.f32 %v3034, %v1210
        %v3187 = vadd.f32 %v3170, %v1215
        %v3188 = vadd.f32 %v2763, %v1220
        %v3189 = vadd.f32 %v2899, %v1225
        %v3190 = vadd.f32 %v3035, %v1230
        %v3191 = vadd.f32 %v3171, %v1235
        %v3192 = vadd.f32 %v2764, %v1240
        %v3193 = vadd.f32 %v2900, %v1245
        %v3194 = vadd.f32 %v3036, %v1250
        %v3195 = vadd.f32 %v3172, %v1255
        %v3196 = vadd.f32 %v2765, %v1260
        %v3197 = vadd.f32 %v2901, %v1265
        %v3198 = vadd.f32 %v3037, %v1270
        %v3199 = vadd.f32 %v3173, %v1275
        %v3200 = vadd.f32 %v2766, %v1280
        %v3201 = vadd.f32 %v2902, %v1285
        %v3202 = vadd.f32 %v3038, %v1290
        %v3203 = vadd.f32 %v3174, %v1295
        %v3204 = vadd.f32 %v2767, %v1300
        %v3205 = vadd.f32 %v2903, %v1305
        %v3206 = vadd.f32 %v3039, %v1310
        %v3207 = vadd.f32 %v3175, %v1315
        %3208 = vst.msk [vmem:[%s274] sm:$0xff] %vm2071, %v3176
        %3209 = vst.msk [vmem:[%s274 + $0x8] sm:$0xff] %vm2071, %v3177
        %3210 = vst.msk [vmem:[%s274 + $0x10] sm:$0xff] %vm2071, %v3178
        %3211 = vst.msk [vmem:[%s274 + $0x18] sm:$0xff] %vm2071, %v3179
        %3212 = vst.msk [vmem:[%s274 + $0x20] sm:$0xff] %vm2071, %v3180
        %3213 = vst.msk [vmem:[%s274 + $0x28] sm:$0xff] %vm2071, %v3181
        %3214 = vst.msk [vmem:[%s274 + $0x30] sm:$0xff] %vm2071, %v3182
        %3215 = vst.msk [vmem:[%s274 + $0x38] sm:$0xff] %vm2071, %v3183
        %3216 = vst.msk [vmem:[%s274 + $0x40] sm:$0xff] %vm2071, %v3184
        %3217 = vst.msk [vmem:[%s274 + $0x48] sm:$0xff] %vm2071, %v3185
        %3218 = vst.msk [vmem:[%s274 + $0x50] sm:$0xff] %vm2071, %v3186
        %3219 = vst.msk [vmem:[%s274 + $0x58] sm:$0xff] %vm2071, %v3187
        %3220 = vst.msk [vmem:[%s274 + $0x60] sm:$0xff] %vm2071, %v3188
        %3221 = vst.msk [vmem:[%s274 + $0x68] sm:$0xff] %vm2071, %v3189
        %3222 = vst.msk [vmem:[%s274 + $0x70] sm:$0xff] %vm2071, %v3190
        %3223 = vst.msk [vmem:[%s274 + $0x78] sm:$0xff] %vm2071, %v3191
        %3224 = vst.msk [vmem:[%s274 + $0x80] sm:$0xff] %vm2071, %v3192
        %3225 = vst.msk [vmem:[%s274 + $0x88] sm:$0xff] %vm2071, %v3193
        %3226 = vst.msk [vmem:[%s274 + $0x90] sm:$0xff] %vm2071, %v3194
        %3227 = vst.msk [vmem:[%s274 + $0x98] sm:$0xff] %vm2071, %v3195
        %3228 = vst.msk [vmem:[%s274 + $0xa0] sm:$0xff] %vm2071, %v3196
        %3229 = vst.msk [vmem:[%s274 + $0xa8] sm:$0xff] %vm2071, %v3197
        %3230 = vst.msk [vmem:[%s274 + $0xb0] sm:$0xff] %vm2071, %v3198
        %3231 = vst.msk [vmem:[%s274 + $0xb8] sm:$0xff] %vm2071, %v3199
        %3232 = vst.msk [vmem:[%s274 + $0xc0] sm:$0xff] %vm2071, %v3200
        %3233 = vst.msk [vmem:[%s274 + $0xc8] sm:$0xff] %vm2071, %v3201
        %3234 = vst.msk [vmem:[%s274 + $0xd0] sm:$0xff] %vm2071, %v3202
        %3235 = vst.msk [vmem:[%s274 + $0xd8] sm:$0xff] %vm2071, %v3203
        %3236 = vst.msk [vmem:[%s274 + $0xe0] sm:$0xff] %vm2071, %v3204
        %3237 = vst.msk [vmem:[%s274 + $0xe8] sm:$0xff] %vm2071, %v3205
        %3238 = vst.msk [vmem:[%s274 + $0xf0] sm:$0xff] %vm2071, %v3206
        %3239 = vst.msk [vmem:[%s274 + $0xf8] sm:$0xff] %vm2071, %v3207
        %s3240 = sand.u32 %s161, 1
        %s3241 = scalar_lea.sflag [#allocation4], %s3240
        %s3242 = sand.u32 %s161, 1
        %s3243 = smul.addr %s3242, 256
        %s3244 = scalar_lea.vmem [#allocation5], %s3243
        // Predicated region
        $region45: #{tpu_custom_call.1} parent=39 // pred_check
          %p3245 = pneg %p171
        $region46: #{tpu_custom_call.1} parent=39 // pred_check_branch
          %3247 = sbr.rel (%p3245) target = $region48
        $region47: #{tpu_custom_call.1} parent=39 // pred_region
          %s3248 = smul.u32 4, %s27
          %s3250 = ssub.s32 4096, 4096
          %3251 = vsyncadd %s3241, %s3250
          %s3252 = smul.addr %s26, 32
          %s3253 = sadd.s32 %s3248, %s3252
          %s3254 = smul.addr %s3253, 128
          %s3255 = scalar_lea.hbm %s5, %s3254
          %s3256 = sshll.u32 %s3244, 4
          %s3257 = int_to_ptr.vmem [resolvable:$true] %s3256
          %3262 = dma.vmem_to_hbm [thread:$0]  %s3257, 4096, %s3255, %s3241, 128, 128, 8
        $region48: #{tpu_custom_call.1} parent=39 // pred_fallthru
          _
      $region40: #{tpu_custom_call.1} parent=5 // pred_fallthru
        _
      %p3263 = scmp.le.s32.totalorder 2, %s17
      // Predicated region
      $region49: #{tpu_custom_call.1} parent=5 // pred_check
        %p3264 = pneg %p3263
      $region50: #{tpu_custom_call.1} parent=5 // pred_check_branch
        %3266 = sbr.rel (%p3264) target = $region52
      $region51: #{tpu_custom_call.1} parent=5 // pred_region
        %s3267 = ssub.s32 %s17, 2
        // Predicated region
        $region53: #{tpu_custom_call.1} parent=51 // pred_check
          %p3268 = pneg %p177
        $region54: #{tpu_custom_call.1} parent=51 // pred_check_branch
          %3270 = sbr.rel (%p3268) target = $region56
        $region55: #{tpu_custom_call.1} parent=51 // pred_region
          %s3271 = sand.u32 %s162, 1
          %s3272 = scalar_lea.sflag [#allocation4], %s3271
          %s3273 = sand.u32 %s162, 1
          %s3274 = smul.addr %s3273, 256
          %s3275 = scalar_lea.vmem [#allocation5], %s3274
          %3276 = dma.done %s3272, 4096
        $region56: #{tpu_custom_call.1} parent=51 // pred_fallthru
          _
      $region52: #{tpu_custom_call.1} parent=5 // pred_fallthru
        _
    $region6: #{tpu_custom_call.1} parent=1 // loop_footer
      %s21 = sadd.s32 1, %s17
    $region7: #{tpu_custom_call.1} parent=1 // loop_footer_branch
      %16 = sbr.rel target = $region3
    $region8: #{tpu_custom_call.1} parent=1 // loop_exit
      _
    %3277 = vsyncpa [#allocation3], 1
    %s3278 = scalar_lea.sflag [#allocation3], 1
    %3279 = vsyncpa %s3278, 1
    %3280 = vsyncpa [#allocation4], 1
    %s3281 = scalar_lea.sflag [#allocation4], 1
    %3282 = vsyncpa %s3281, 1

</llo_original>
